<compile_context>
chip_gen: v7x
topology: tpu7x:2x2x1
jax: 0.10.0
libtpu: 0.0.40
codegen_flags: <defaults>
</compile_context>

<pallas_src>
import functools

import jax
import jax.numpy as jnp
from jax.experimental import pallas as pl
from jax.experimental.pallas import tpu as pltpu

LANE = 128


def _round_up(x, m):
    return ((x + m - 1) // m) * m


def _pad2(a, rows, cols):
    r, c = a.shape
    return jnp.pad(a, ((0, rows - r), (0, cols - c)))


# ---------------------------------------------------------------------------
# Kernel
# ---------------------------------------------------------------------------
def _vae_kernel(x_ref, eps_ref,
                ew1, eb1,                      # fused encoder layer 1 (mu || logvar)
                mw2, mb2, mw3, mb3,            # mu network layers 2-3
                lw2, lb2, lw3, lb3,            # logvar network layers 2-3
                dw1, db1, dw2, db2, dw3, db3,  # decoder network
                recon_ref, mu_ref, logvar_ref):
    hp = mw2.shape[0]  # padded hidden dim (multiple of 128)

    # Fused encoder layer 1: one lane-dense (B, dxp) x (dxp, 2*hp) MXU matmul.
    h1 = jnp.dot(x_ref[...], ew1[...], preferred_element_type=jnp.float32)
    h1 = jnp.maximum(h1 + eb1[...], 0.0).astype(jnp.bfloat16)

    def tail(h, w2, b2, w3, b3):
        h = jnp.dot(h, w2[...], preferred_element_type=jnp.float32)
        h = jnp.maximum(h + b2[...], 0.0).astype(jnp.bfloat16)
        return jnp.dot(h, w3[...], preferred_element_type=jnp.float32) + b3[...]

    mu = tail(h1[:, :hp], mw2, mb2, mw3, mb3)
    logvar = tail(h1[:, hp:], lw2, lb2, lw3, lb3)

    # Store mu/logvar right away: shrinks their f32 live range across the decoder.
    mu_ref[...] = mu.astype(mu_ref.dtype)
    logvar_ref[...] = logvar.astype(logvar_ref.dtype)

    # Reparameterization trick: z = eps * exp(0.5 * logvar) + mu  (exp -> EUP, f32).
    z = eps_ref[...] * jnp.exp(0.5 * logvar) + mu

    # Decoder MLP.
    h = jnp.dot(z.astype(jnp.bfloat16), dw1[...], preferred_element_type=jnp.float32)
    h = jnp.maximum(h + db1[...], 0.0).astype(jnp.bfloat16)
    h = jnp.dot(h, dw2[...], preferred_element_type=jnp.float32)
    h = jnp.maximum(h + db2[...], 0.0).astype(jnp.bfloat16)
    recon = jnp.dot(h, dw3[...], preferred_element_type=jnp.float32) + db3[...]
    recon_ref[...] = recon.astype(recon_ref.dtype)


# ---------------------------------------------------------------------------
# Parameter preparation (padding to lane multiples, bf16 weights, fused layer 1)
# ---------------------------------------------------------------------------
def prepare_vae_params(params, dim_x, dim_z, hidden=256):
    """Zero-pad feature dims to multiples of 128; weights -> bf16, biases -> f32.

    The mu-net and logvar-net first layers are concatenated along the output dim
    so the kernel runs a single fused encoder layer-1 matmul.
    """
    dxp = _round_up(dim_x, LANE)
    dzp = _round_up(dim_z, LANE)
    hp = _round_up(hidden, LANE)

    def wpad(name, r, c):
        return _pad2(params[name], r, c).astype(jnp.bfloat16)

    def bpad(name, c):
        return _pad2(params[name], 1, c).astype(jnp.float32)

    enc_w1 = jnp.concatenate([wpad("mu_w1", dxp, hp), wpad("logvar_w1", dxp, hp)], axis=1)
    enc_b1 = jnp.concatenate([bpad("mu_b1", hp), bpad("logvar_b1", hp)], axis=1)

    return {
        "enc_w1": enc_w1, "enc_b1": enc_b1,
        "mu_w2": wpad("mu_w2", hp, hp), "mu_b2": bpad("mu_b2", hp),
        "mu_w3": wpad("mu_w3", hp, dzp), "mu_b3": bpad("mu_b3", dzp),
        "lv_w2": wpad("logvar_w2", hp, hp), "lv_b2": bpad("logvar_b2", hp),
        "lv_w3": wpad("logvar_w3", hp, dzp), "lv_b3": bpad("logvar_b3", dzp),
        "dec_w1": wpad("dec_w1", dzp, hp), "dec_b1": bpad("dec_b1", hp),
        "dec_w2": wpad("dec_w2", hp, hp), "dec_b2": bpad("dec_b2", hp),
        "dec_w3": wpad("dec_w3", hp, dxp), "dec_b3": bpad("dec_b3", dxp),
    }


# ---------------------------------------------------------------------------
# Forward pass wrapper
# ---------------------------------------------------------------------------
@functools.partial(jax.jit, static_argnames=("dim_x", "dim_z"))
def vae_forward(x, eps, pp, *, dim_x, dim_z):
    """VAE forward: returns (x_reconstructed, mu, logvar).

    `eps` is the standard-normal noise used by the reparameterization trick
    (passed in explicitly instead of torch.randn for determinism/testability).
    """
    B = x.shape[0]
    dxp = pp["enc_w1"].shape[0]   # padded input/reconstruction feature dim
    hp = pp["mu_w2"].shape[0]     # padded hidden dim
    dzp = pp["mu_w3"].shape[1]    # padded latent dim

    # Lane-dense activation padding.  x -> bf16 (the first matmul quantizes it
    # anyway; this halves its HBM->VMEM DMA).  eps stays f32 for reparam precision.
    # Padding is safe: padded mu/logvar are 0, eps padding is 0, and the decoder's
    # padded weight rows are 0, so padded lanes never leak into real outputs.
    x_p = jnp.pad(x, ((0, 0), (0, dxp - x.shape[1]))).astype(jnp.bfloat16)
    eps_p = jnp.pad(eps.astype(jnp.float32), ((0, 0), (0, dzp - eps.shape[1])))

    # Batch tiling:
    #  * pad B to a multiple of 8 so output stores are sublane-aligned (unmasked),
    #  * < 256 rows: single fat block (latency-bound, no pipeline overhead),
    #  * >= 256 rows: >= 2 "parallel" tiles (v7x megacore sharding), capped at 1024
    #    rows so per-step pipeline overhead is amortized and VMEM stays modest.
    B8 = _round_up(B, 8)
    if B8 < 256:
        block_b = B8
    else:
        block_b = min(1024, _round_up((B8 + 1) // 2, 8))
    Bp = _round_up(B8, block_b)
    if Bp != B:
        x_p = jnp.pad(x_p, ((0, Bp - B), (0, 0)))
        eps_p = jnp.pad(eps_p, ((0, Bp - B), (0, 0)))
    grid = (Bp // block_b,)

    def full(arr):
        # Constant block index across the grid: DMA'd once, stays resident.
        return pl.BlockSpec(arr.shape, lambda i: (0,) * arr.ndim)

    def rows(cols):
        return pl.BlockSpec((block_b, cols), lambda i: (i, 0))

    weights = (pp["enc_w1"], pp["enc_b1"],
               pp["mu_w2"], pp["mu_b2"], pp["mu_w3"], pp["mu_b3"],
               pp["lv_w2"], pp["lv_b2"], pp["lv_w3"], pp["lv_b3"],
               pp["dec_w1"], pp["dec_b1"], pp["dec_w2"], pp["dec_b2"],
               pp["dec_w3"], pp["dec_b3"])
    in_specs = [rows(dxp), rows(dzp)] + [full(w) for w in weights]
    out_specs = [rows(dxp), rows(dzp), rows(dzp)]
    out_shape = (
        jax.ShapeDtypeStruct((Bp, dxp), jnp.float32),   # x_reconstructed
        jax.ShapeDtypeStruct((Bp, dzp), jnp.float32),   # mu
        jax.ShapeDtypeStruct((Bp, dzp), jnp.float32),   # logvar
    )

    # Advisory cost estimate so XLA schedules this kernel well.
    mlp_flops = lambda din, dout: 2 * (din * hp + hp * hp + hp * dout)
    flops = Bp * (2 * mlp_flops(dxp, dzp) + mlp_flops(dzp, dxp) + 4 * dzp)
    weight_bytes = sum(int(w.size) * w.dtype.itemsize for w in weights)
    io_bytes = Bp * (2 * dxp + 4 * dzp) + 4 * Bp * (dxp + 2 * dzp)
    cost = pl.CostEstimate(flops=int(flops),
                           transcendentals=int(Bp * dzp),
                           bytes_accessed=int(weight_bytes + io_bytes))

    recon_p, mu_out, logvar_out = pl.pallas_call(
        _vae_kernel,
        out_shape=out_shape,
        grid_spec=pltpu.PrefetchScalarGridSpec(
            num_scalar_prefetch=0,
            grid=grid,
            in_specs=in_specs,
            out_specs=out_specs,
        ),
        compiler_params=pltpu.CompilerParams(
            # Default VMEM limit is ample (kernel needs only a few MiB); do NOT
            # pin 64 MiB, which would be the entire per-core VMEM on v7x.
            dimension_semantics=("parallel",),
        ),
        cost_estimate=cost,
    )(x_p, eps_p, *weights)

    return (recon_p[:B, :dim_x], mu_out[:B, :dim_z], logvar_out[:B, :dim_z])


# ---------------------------------------------------------------------------
# Pure-JAX reference (mirrors the kernel math: bf16 operands, f32 accumulation)
# ---------------------------------------------------------------------------
def vae_reference(x, eps, pp, dim_x, dim_z):
    dxp = pp["enc_w1"].shape[0]
    hp = pp["mu_w2"].shape[0]
    dzp = pp["mu_w3"].shape[1]

    x_p = jnp.pad(x, ((0, 0), (0, dxp - x.shape[1]))).astype(jnp.bfloat16)
    eps_p = jnp.pad(eps.astype(jnp.float32), ((0, 0), (0, dzp - eps.shape[1])))

    h1 = jnp.dot(x_p, pp["enc_w1"], preferred_element_type=jnp.float32)
    h1 = jnp.maximum(h1 + pp["enc_b1"], 0.0).astype(jnp.bfloat16)

    def tail(h, w2, b2, w3, b3):
        h = jnp.dot(h, w2, preferred_element_type=jnp.float32)
        h = jnp.maximum(h + b2, 0.0).astype(jnp.bfloat16)
        return jnp.dot(h, w3, preferred_element_type=jnp.float32) + b3

    mu = tail(h1[:, :hp], pp["mu_w2"], pp["mu_b2"], pp["mu_w3"], pp["mu_b3"])
    logvar = tail(h1[:, hp:], pp["lv_w2"], pp["lv_b2"], pp["lv_w3"], pp["lv_b3"])
    z = eps_p * jnp.exp(0.5 * logvar) + mu

    h = jnp.dot(z.astype(jnp.bfloat16), pp["dec_w1"], preferred_element_type=jnp.float32)
    h = jnp.maximum(h + pp["dec_b1"], 0.0).astype(jnp.bfloat16)
    h = jnp.dot(h, pp["dec_w2"], preferred_element_type=jnp.float32)
    h = jnp.maximum(h + pp["dec_b2"], 0.0).astype(jnp.bfloat16)
    recon = jnp.dot(h, pp["dec_w3"], preferred_element_type=jnp.float32) + pp["dec_b3"]
    return recon[:, :dim_x], mu[:, :dim_z], logvar[:, :dim_z]


def init_fcnet_params(key, prefix, dim_in, dim_out, hidden=256, dtype=jnp.float32):
    """PyTorch-Linear-style init: U(-1/sqrt(fan_in), 1/sqrt(fan_in))."""
    dims = [dim_in, hidden, hidden, dim_out]
    params = {}
    for idx in range(3):
        key, kw, kb = jax.random.split(key, 3)
        fan_in, fan_out = dims[idx], dims[idx + 1]
        bound = 1.0 / (fan_in ** 0.5)
        params[f"{prefix}_w{idx + 1}"] = jax.random.uniform(
            kw, (fan_in, fan_out), dtype=dtype, minval=-bound, maxval=bound)
        params[f"{prefix}_b{idx + 1}"] = jax.random.uniform(
            kb, (1, fan_out), dtype=dtype, minval=-bound, maxval=bound)
    return params


if __name__ == "__main__":
    key = jax.random.PRNGKey(0)
    batch, dim_x, dim_z, hidden = 16, 32, 8, 256

    k_x, k_eps, k_mu, k_lv, k_dec = jax.random.split(key, 5)
    x = jax.random.normal(k_x, (batch, dim_x), dtype=jnp.float32)
    eps = jax.random.normal(k_eps, (batch, dim_z), dtype=jnp.float32)

    params = {}
    params.update(init_fcnet_params(k_mu, "mu", dim_x, dim_z, hidden))
    params.update(init_fcnet_params(k_lv, "logvar", dim_x, dim_z, hidden))
    params.update(init_fcnet_params(k_dec, "dec", dim_z, dim_x, hidden))

    padded = prepare_vae_params(params, dim_x, dim_z, hidden)

    recon, mu, logvar = vae_forward(x, eps, padded, dim_x=dim_x, dim_z=dim_z)
    (recon, mu, logvar) = jax.block_until_ready((recon, mu, logvar))

    r_recon, r_mu, r_logvar = vae_reference(x, eps, padded, dim_x, dim_z)

    assert recon.shape == (batch, dim_x)
    assert mu.shape == (batch, dim_z) and logvar.shape == (batch, dim_z)
    assert jnp.allclose(mu, r_mu, atol=2e-2, rtol=2e-2)
    assert jnp.allclose(logvar, r_logvar, atol=2e-2, rtol=2e-2)
    assert jnp.allclose(recon, r_recon, atol=2e-2, rtol=2e-2)

    # TODO(synk): loss()/marginal_prob() (MSE/BCE + KL, importance sampling) are host-side
    # reductions over the forward outputs and are not implemented as Pallas kernels.
    print("KERNEL_OK")
</pallas_src>

<mosaic_0001>
module attributes {stable_mosaic.version = 11 : i64} {
  func.func @_vae_kernel(%arg0: i32, %arg1: memref<16x128xbf16, #tpu.memory_space<vmem>>, %arg2: memref<16x128xf32, #tpu.memory_space<vmem>>, %arg3: memref<128x512xbf16, #tpu.memory_space<vmem>>, %arg4: memref<1x512xf32, #tpu.memory_space<vmem>>, %arg5: memref<256x256xbf16, #tpu.memory_space<vmem>>, %arg6: memref<1x256xf32, #tpu.memory_space<vmem>>, %arg7: memref<256x128xbf16, #tpu.memory_space<vmem>>, %arg8: memref<1x128xf32, #tpu.memory_space<vmem>>, %arg9: memref<256x256xbf16, #tpu.memory_space<vmem>>, %arg10: memref<1x256xf32, #tpu.memory_space<vmem>>, %arg11: memref<256x128xbf16, #tpu.memory_space<vmem>>, %arg12: memref<1x128xf32, #tpu.memory_space<vmem>>, %arg13: memref<128x256xbf16, #tpu.memory_space<vmem>>, %arg14: memref<1x256xf32, #tpu.memory_space<vmem>>, %arg15: memref<256x256xbf16, #tpu.memory_space<vmem>>, %arg16: memref<1x256xf32, #tpu.memory_space<vmem>>, %arg17: memref<256x128xbf16, #tpu.memory_space<vmem>>, %arg18: memref<1x128xf32, #tpu.memory_space<vmem>>, %arg19: memref<16x128xf32, #tpu.memory_space<vmem>>, %arg20: memref<16x128xf32, #tpu.memory_space<vmem>>, %arg21: memref<16x128xf32, #tpu.memory_space<vmem>>) attributes {dimension_semantics = [#tpu.dimension_semantics<parallel>], iteration_bounds = array<i64: 1>, scalar_prefetch = 0 : i64, scratch_operands = 0 : i64, tpu.core_type = #tpu.core_type<tc>, window_params = [{transform_indices = @transform_0, window_bounds = array<i64: 16, 128>}, {transform_indices = @transform_1, window_bounds = array<i64: 16, 128>}, {pipeline_mode = #tpu.pipeline_mode<synchronous>, transform_indices = @transform_2, window_bounds = array<i64: 128, 512>}, {pipeline_mode = #tpu.pipeline_mode<synchronous>, transform_indices = @transform_3, window_bounds = array<i64: 1, 512>}, {pipeline_mode = #tpu.pipeline_mode<synchronous>, transform_indices = @transform_4, window_bounds = array<i64: 256, 256>}, {pipeline_mode = #tpu.pipeline_mode<synchronous>, transform_indices = @transform_5, window_bounds = array<i64: 1, 256>}, {pipeline_mode = #tpu.pipeline_mode<synchronous>, transform_indices = @transform_6, window_bounds = array<i64: 256, 128>}, {pipeline_mode = #tpu.pipeline_mode<synchronous>, transform_indices = @transform_7, window_bounds = array<i64: 1, 128>}, {pipeline_mode = #tpu.pipeline_mode<synchronous>, transform_indices = @transform_8, window_bounds = array<i64: 256, 256>}, {pipeline_mode = #tpu.pipeline_mode<synchronous>, transform_indices = @transform_9, window_bounds = array<i64: 1, 256>}, {pipeline_mode = #tpu.pipeline_mode<synchronous>, transform_indices = @transform_10, window_bounds = array<i64: 256, 128>}, {pipeline_mode = #tpu.pipeline_mode<synchronous>, transform_indices = @transform_11, window_bounds = array<i64: 1, 128>}, {pipeline_mode = #tpu.pipeline_mode<synchronous>, transform_indices = @transform_12, window_bounds = array<i64: 128, 256>}, {pipeline_mode = #tpu.pipeline_mode<synchronous>, transform_indices = @transform_13, window_bounds = array<i64: 1, 256>}, {pipeline_mode = #tpu.pipeline_mode<synchronous>, transform_indices = @transform_14, window_bounds = array<i64: 256, 256>}, {pipeline_mode = #tpu.pipeline_mode<synchronous>, transform_indices = @transform_15, window_bounds = array<i64: 1, 256>}, {pipeline_mode = #tpu.pipeline_mode<synchronous>, transform_indices = @transform_16, window_bounds = array<i64: 256, 128>}, {pipeline_mode = #tpu.pipeline_mode<synchronous>, transform_indices = @transform_17, window_bounds = array<i64: 1, 128>}, {transform_indices = @transform_18, window_bounds = array<i64: 16, 128>}, {transform_indices = @transform_19, window_bounds = array<i64: 16, 128>}, {transform_indices = @transform_20, window_bounds = array<i64: 16, 128>}]} {
    %c0 = arith.constant 0 : index
    %c0_0 = arith.constant 0 : index
    %0 = vector.load %arg1[%c0, %c0_0] : memref<16x128xbf16, #tpu.memory_space<vmem>>, vector<16x128xbf16>
    %c0_1 = arith.constant 0 : index
    %c0_2 = arith.constant 0 : index
    %1 = vector.load %arg3[%c0_1, %c0_2] : memref<128x512xbf16, #tpu.memory_space<vmem>>, vector<128x512xbf16>
    %cst = arith.constant dense<0.000000e+00> : vector<16x512xf32>
    %2 = tpu.matmul %0, %1, %cst {dimension_numbers = #tpu.dot_dimension_numbers<[1], [0], [0], [1], [0, 0, 1, 1], [], []>} : vector<16x128xbf16>, vector<128x512xbf16>, vector<16x512xf32> -> vector<16x512xf32>
    %c0_3 = arith.constant 0 : index
    %c0_4 = arith.constant 0 : index
    %3 = vector.load %arg4[%c0_3, %c0_4] : memref<1x512xf32, #tpu.memory_space<vmem>>, vector<1x512xf32>
    %4 = vector.broadcast %3 : vector<1x512xf32> to vector<16x512xf32>
    %5 = arith.addf %2, %4 : vector<16x512xf32>
    %cst_5 = arith.constant 0.000000e+00 : f32
    %6 = vector.broadcast %cst_5 : f32 to vector<16x512xf32>
    %7 = arith.maximumf %5, %6 : vector<16x512xf32>
    %8 = arith.truncf %7 : vector<16x512xf32> to vector<16x512xbf16>
    %9 = vector.extract_strided_slice %8 {offsets = [0, 0], sizes = [16, 256], strides = [1, 1]} : vector<16x512xbf16> to vector<16x256xbf16>
    %c0_6 = arith.constant 0 : index
    %c0_7 = arith.constant 0 : index
    %10 = vector.load %arg5[%c0_6, %c0_7] : memref<256x256xbf16, #tpu.memory_space<vmem>>, vector<256x256xbf16>
    %cst_8 = arith.constant dense<0.000000e+00> : vector<16x256xf32>
    %11 = tpu.matmul %9, %10, %cst_8 {dimension_numbers = #tpu.dot_dimension_numbers<[1], [0], [0], [1], [0, 0, 1, 1], [], []>} : vector<16x256xbf16>, vector<256x256xbf16>, vector<16x256xf32> -> vector<16x256xf32>
    %c0_9 = arith.constant 0 : index
    %c0_10 = arith.constant 0 : index
    %12 = vector.load %arg6[%c0_9, %c0_10] : memref<1x256xf32, #tpu.memory_space<vmem>>, vector<1x256xf32>
    %13 = vector.broadcast %12 : vector<1x256xf32> to vector<16x256xf32>
    %14 = arith.addf %11, %13 : vector<16x256xf32>
    %cst_11 = arith.constant 0.000000e+00 : f32
    %15 = vector.broadcast %cst_11 : f32 to vector<16x256xf32>
    %16 = arith.maximumf %14, %15 : vector<16x256xf32>
    %17 = arith.truncf %16 : vector<16x256xf32> to vector<16x256xbf16>
    %c0_12 = arith.constant 0 : index
    %c0_13 = arith.constant 0 : index
    %18 = vector.load %arg7[%c0_12, %c0_13] : memref<256x128xbf16, #tpu.memory_space<vmem>>, vector<256x128xbf16>
    %cst_14 = arith.constant dense<0.000000e+00> : vector<16x128xf32>
    %19 = tpu.matmul %17, %18, %cst_14 {dimension_numbers = #tpu.dot_dimension_numbers<[1], [0], [0], [1], [0, 0, 1, 1], [], []>} : vector<16x256xbf16>, vector<256x128xbf16>, vector<16x128xf32> -> vector<16x128xf32>
    %c0_15 = arith.constant 0 : index
    %c0_16 = arith.constant 0 : index
    %20 = vector.load %arg8[%c0_15, %c0_16] : memref<1x128xf32, #tpu.memory_space<vmem>>, vector<1x128xf32>
    %21 = vector.broadcast %20 : vector<1x128xf32> to vector<16x128xf32>
    %22 = arith.addf %19, %21 : vector<16x128xf32>
    %23 = vector.extract_strided_slice %8 {offsets = [0, 256], sizes = [16, 256], strides = [1, 1]} : vector<16x512xbf16> to vector<16x256xbf16>
    %c0_17 = arith.constant 0 : index
    %c0_18 = arith.constant 0 : index
    %24 = vector.load %arg9[%c0_17, %c0_18] : memref<256x256xbf16, #tpu.memory_space<vmem>>, vector<256x256xbf16>
    %cst_19 = arith.constant dense<0.000000e+00> : vector<16x256xf32>
    %25 = tpu.matmul %23, %24, %cst_19 {dimension_numbers = #tpu.dot_dimension_numbers<[1], [0], [0], [1], [0, 0, 1, 1], [], []>} : vector<16x256xbf16>, vector<256x256xbf16>, vector<16x256xf32> -> vector<16x256xf32>
    %c0_20 = arith.constant 0 : index
    %c0_21 = arith.constant 0 : index
    %26 = vector.load %arg10[%c0_20, %c0_21] : memref<1x256xf32, #tpu.memory_space<vmem>>, vector<1x256xf32>
    %27 = vector.broadcast %26 : vector<1x256xf32> to vector<16x256xf32>
    %28 = arith.addf %25, %27 : vector<16x256xf32>
    %cst_22 = arith.constant 0.000000e+00 : f32
    %29 = vector.broadcast %cst_22 : f32 to vector<16x256xf32>
    %30 = arith.maximumf %28, %29 : vector<16x256xf32>
    %31 = arith.truncf %30 : vector<16x256xf32> to vector<16x256xbf16>
    %c0_23 = arith.constant 0 : index
    %c0_24 = arith.constant 0 : index
    %32 = vector.load %arg11[%c0_23, %c0_24] : memref<256x128xbf16, #tpu.memory_space<vmem>>, vector<256x128xbf16>
    %cst_25 = arith.constant dense<0.000000e+00> : vector<16x128xf32>
    %33 = tpu.matmul %31, %32, %cst_25 {dimension_numbers = #tpu.dot_dimension_numbers<[1], [0], [0], [1], [0, 0, 1, 1], [], []>} : vector<16x256xbf16>, vector<256x128xbf16>, vector<16x128xf32> -> vector<16x128xf32>
    %c0_26 = arith.constant 0 : index
    %c0_27 = arith.constant 0 : index
    %34 = vector.load %arg12[%c0_26, %c0_27] : memref<1x128xf32, #tpu.memory_space<vmem>>, vector<1x128xf32>
    %35 = vector.broadcast %34 : vector<1x128xf32> to vector<16x128xf32>
    %36 = arith.addf %33, %35 : vector<16x128xf32>
    %c0_28 = arith.constant 0 : index
    %c0_29 = arith.constant 0 : index
    %37 = vector.load %arg20[%c0_28, %c0_29] : memref<16x128xf32, #tpu.memory_space<vmem>>, vector<16x128xf32>
    tpu.vector_store %arg20[%c0_28, %c0_29], %22 {strides = array<i32>} : memref<16x128xf32, #tpu.memory_space<vmem>>, vector<16x128xf32>,
    %c0_30 = arith.constant 0 : index
    %c0_31 = arith.constant 0 : index
    %38 = vector.load %arg21[%c0_30, %c0_31] : memref<16x128xf32, #tpu.memory_space<vmem>>, vector<16x128xf32>
    tpu.vector_store %arg21[%c0_30, %c0_31], %36 {strides = array<i32>} : memref<16x128xf32, #tpu.memory_space<vmem>>, vector<16x128xf32>,
    %c0_32 = arith.constant 0 : index
    %c0_33 = arith.constant 0 : index
    %39 = vector.load %arg2[%c0_32, %c0_33] : memref<16x128xf32, #tpu.memory_space<vmem>>, vector<16x128xf32>
    %cst_34 = arith.constant 5.000000e-01 : f32
    %40 = vector.broadcast %cst_34 : f32 to vector<16x128xf32>
    %41 = arith.mulf %40, %36 : vector<16x128xf32>
    %42 = math.exp %41 : vector<16x128xf32>
    %43 = arith.mulf %39, %42 : vector<16x128xf32>
    %44 = arith.addf %43, %22 : vector<16x128xf32>
    %45 = arith.truncf %44 : vector<16x128xf32> to vector<16x128xbf16>
    %c0_35 = arith.constant 0 : index
    %c0_36 = arith.constant 0 : index
    %46 = vector.load %arg13[%c0_35, %c0_36] : memref<128x256xbf16, #tpu.memory_space<vmem>>, vector<128x256xbf16>
    %cst_37 = arith.constant dense<0.000000e+00> : vector<16x256xf32>
    %47 = tpu.matmul %45, %46, %cst_37 {dimension_numbers = #tpu.dot_dimension_numbers<[1], [0], [0], [1], [0, 0, 1, 1], [], []>} : vector<16x128xbf16>, vector<128x256xbf16>, vector<16x256xf32> -> vector<16x256xf32>
    %c0_38 = arith.constant 0 : index
    %c0_39 = arith.constant 0 : index
    %48 = vector.load %arg14[%c0_38, %c0_39] : memref<1x256xf32, #tpu.memory_space<vmem>>, vector<1x256xf32>
    %49 = vector.broadcast %48 : vector<1x256xf32> to vector<16x256xf32>
    %50 = arith.addf %47, %49 : vector<16x256xf32>
    %cst_40 = arith.constant 0.000000e+00 : f32
    %51 = vector.broadcast %cst_40 : f32 to vector<16x256xf32>
    %52 = arith.maximumf %50, %51 : vector<16x256xf32>
    %53 = arith.truncf %52 : vector<16x256xf32> to vector<16x256xbf16>
    %c0_41 = arith.constant 0 : index
    %c0_42 = arith.constant 0 : index
    %54 = vector.load %arg15[%c0_41, %c0_42] : memref<256x256xbf16, #tpu.memory_space<vmem>>, vector<256x256xbf16>
    %cst_43 = arith.constant dense<0.000000e+00> : vector<16x256xf32>
    %55 = tpu.matmul %53, %54, %cst_43 {dimension_numbers = #tpu.dot_dimension_numbers<[1], [0], [0], [1], [0, 0, 1, 1], [], []>} : vector<16x256xbf16>, vector<256x256xbf16>, vector<16x256xf32> -> vector<16x256xf32>
    %c0_44 = arith.constant 0 : index
    %c0_45 = arith.constant 0 : index
    %56 = vector.load %arg16[%c0_44, %c0_45] : memref<1x256xf32, #tpu.memory_space<vmem>>, vector<1x256xf32>
    %57 = vector.broadcast %56 : vector<1x256xf32> to vector<16x256xf32>
    %58 = arith.addf %55, %57 : vector<16x256xf32>
    %cst_46 = arith.constant 0.000000e+00 : f32
    %59 = vector.broadcast %cst_46 : f32 to vector<16x256xf32>
    %60 = arith.maximumf %58, %59 : vector<16x256xf32>
    %61 = arith.truncf %60 : vector<16x256xf32> to vector<16x256xbf16>
    %c0_47 = arith.constant 0 : index
    %c0_48 = arith.constant 0 : index
    %62 = vector.load %arg17[%c0_47, %c0_48] : memref<256x128xbf16, #tpu.memory_space<vmem>>, vector<256x128xbf16>
    %cst_49 = arith.constant dense<0.000000e+00> : vector<16x128xf32>
    %63 = tpu.matmul %61, %62, %cst_49 {dimension_numbers = #tpu.dot_dimension_numbers<[1], [0], [0], [1], [0, 0, 1, 1], [], []>} : vector<16x256xbf16>, vector<256x128xbf16>, vector<16x128xf32> -> vector<16x128xf32>
    %c0_50 = arith.constant 0 : index
    %c0_51 = arith.constant 0 : index
    %64 = vector.load %arg18[%c0_50, %c0_51] : memref<1x128xf32, #tpu.memory_space<vmem>>, vector<1x128xf32>
    %65 = vector.broadcast %64 : vector<1x128xf32> to vector<16x128xf32>
    %66 = arith.addf %63, %65 : vector<16x128xf32>
    %c0_52 = arith.constant 0 : index
    %c0_53 = arith.constant 0 : index
    %67 = vector.load %arg19[%c0_52, %c0_53] : memref<16x128xf32, #tpu.memory_space<vmem>>, vector<16x128xf32>
    tpu.vector_store %arg19[%c0_52, %c0_53], %66 {strides = array<i32>} : memref<16x128xf32, #tpu.memory_space<vmem>>, vector<16x128xf32>,
    return
  }
  func.func @transform_0(%arg0: i32) -> (i32, i32) {
    %c0_i32 = arith.constant 0 : i32
    %c0_i32_0 = arith.constant 0 : i32
    return %arg0, %c0_i32 : i32, i32
  }
  func.func @transform_1(%arg0: i32) -> (i32, i32) {
    %c0_i32 = arith.constant 0 : i32
    %c0_i32_0 = arith.constant 0 : i32
    return %arg0, %c0_i32 : i32, i32
  }
  func.func @transform_2(%arg0: i32) -> (i32, i32) {
    %c0_i32 = arith.constant 0 : i32
    %c0_i32_0 = arith.constant 0 : i32
    %c0_i32_1 = arith.constant 0 : i32
    return %c0_i32, %c0_i32_0 : i32, i32
  }
  func.func @transform_3(%arg0: i32) -> (i32, i32) {
    %c0_i32 = arith.constant 0 : i32
    %c0_i32_0 = arith.constant 0 : i32
    %c0_i32_1 = arith.constant 0 : i32
    return %c0_i32, %c0_i32_0 : i32, i32
  }
  func.func @transform_4(%arg0: i32) -> (i32, i32) {
    %c0_i32 = arith.constant 0 : i32
    %c0_i32_0 = arith.constant 0 : i32
    %c0_i32_1 = arith.constant 0 : i32
    return %c0_i32, %c0_i32_0 : i32, i32
  }
  func.func @transform_5(%arg0: i32) -> (i32, i32) {
    %c0_i32 = arith.constant 0 : i32
    %c0_i32_0 = arith.constant 0 : i32
    %c0_i32_1 = arith.constant 0 : i32
    return %c0_i32, %c0_i32_0 : i32, i32
  }
  func.func @transform_6(%arg0: i32) -> (i32, i32) {
    %c0_i32 = arith.constant 0 : i32
    %c0_i32_0 = arith.constant 0 : i32
    %c0_i32_1 = arith.constant 0 : i32
    return %c0_i32, %c0_i32_0 : i32, i32
  }
  func.func @transform_7(%arg0: i32) -> (i32, i32) {
    %c0_i32 = arith.constant 0 : i32
    %c0_i32_0 = arith.constant 0 : i32
    %c0_i32_1 = arith.constant 0 : i32
    return %c0_i32, %c0_i32_0 : i32, i32
  }
  func.func @transform_8(%arg0: i32) -> (i32, i32) {
    %c0_i32 = arith.constant 0 : i32
    %c0_i32_0 = arith.constant 0 : i32
    %c0_i32_1 = arith.constant 0 : i32
    return %c0_i32, %c0_i32_0 : i32, i32
  }
  func.func @transform_9(%arg0: i32) -> (i32, i32) {
    %c0_i32 = arith.constant 0 : i32
    %c0_i32_0 = arith.constant 0 : i32
    %c0_i32_1 = arith.constant 0 : i32
    return %c0_i32, %c0_i32_0 : i32, i32
  }
  func.func @transform_10(%arg0: i32) -> (i32, i32) {
    %c0_i32 = arith.constant 0 : i32
    %c0_i32_0 = arith.constant 0 : i32
    %c0_i32_1 = arith.constant 0 : i32
    return %c0_i32, %c0_i32_0 : i32, i32
  }
  func.func @transform_11(%arg0: i32) -> (i32, i32) {
    %c0_i32 = arith.constant 0 : i32
    %c0_i32_0 = arith.constant 0 : i32
    %c0_i32_1 = arith.constant 0 : i32
    return %c0_i32, %c0_i32_0 : i32, i32
  }
  func.func @transform_12(%arg0: i32) -> (i32, i32) {
    %c0_i32 = arith.constant 0 : i32
    %c0_i32_0 = arith.constant 0 : i32
    %c0_i32_1 = arith.constant 0 : i32
    return %c0_i32, %c0_i32_0 : i32, i32
  }
  func.func @transform_13(%arg0: i32) -> (i32, i32) {
    %c0_i32 = arith.constant 0 : i32
    %c0_i32_0 = arith.constant 0 : i32
    %c0_i32_1 = arith.constant 0 : i32
    return %c0_i32, %c0_i32_0 : i32, i32
  }
  func.func @transform_14(%arg0: i32) -> (i32, i32) {
    %c0_i32 = arith.constant 0 : i32
    %c0_i32_0 = arith.constant 0 : i32
    %c0_i32_1 = arith.constant 0 : i32
    return %c0_i32, %c0_i32_0 : i32, i32
  }
  func.func @transform_15(%arg0: i32) -> (i32, i32) {
    %c0_i32 = arith.constant 0 : i32
    %c0_i32_0 = arith.constant 0 : i32
    %c0_i32_1 = arith.constant 0 : i32
    return %c0_i32, %c0_i32_0 : i32, i32
  }
  func.func @transform_16(%arg0: i32) -> (i32, i32) {
    %c0_i32 = arith.constant 0 : i32
    %c0_i32_0 = arith.constant 0 : i32
    %c0_i32_1 = arith.constant 0 : i32
    return %c0_i32, %c0_i32_0 : i32, i32
  }
  func.func @transform_17(%arg0: i32) -> (i32, i32) {
    %c0_i32 = arith.constant 0 : i32
    %c0_i32_0 = arith.constant 0 : i32
    %c0_i32_1 = arith.constant 0 : i32
    return %c0_i32, %c0_i32_0 : i32, i32
  }
  func.func @transform_18(%arg0: i32) -> (i32, i32) {
    %c0_i32 = arith.constant 0 : i32
    %c0_i32_0 = arith.constant 0 : i32
    return %arg0, %c0_i32 : i32, i32
  }
  func.func @transform_19(%arg0: i32) -> (i32, i32) {
    %c0_i32 = arith.constant 0 : i32
    %c0_i32_0 = arith.constant 0 : i32
    return %arg0, %c0_i32 : i32, i32
  }
  func.func @transform_20(%arg0: i32) -> (i32, i32) {
    %c0_i32 = arith.constant 0 : i32
    %c0_i32_0 = arith.constant 0 : i32
    return %arg0, %c0_i32 : i32, i32
  }
}

</mosaic_0001>

<llo_original>
// kernel: vae_forward.1
$region0: #{vae_forward.1}
  #allocation0 [shape = 'u32[]', space=smem, size = 0x4, offset = 0x4, fixed_abs, tag = 'smem constant byte address 0x4 - core index']
  #allocation1 [shape = 'u32[144,128]{1,0:T(1,128)}', space=vmem, size = 0x12000, scoped, tag = 'internal scratch']
  %s0 = inlined_call_operand.vmem [shape: bf16[16,128], index: 0, kind: input, shape index: {}]
  %s1 = inlined_call_operand.vmem [shape: f32[16,128], index: 1, kind: input, shape index: {}]
  %s2 = inlined_call_operand.hbm [shape: bf16[128,512], index: 2, kind: input, shape index: {}]
  %s3 = inlined_call_operand.vmem [shape: f32[1,512], index: 3, kind: input, shape index: {}]
  %s4 = inlined_call_operand.hbm [shape: bf16[256,256], index: 4, kind: input, shape index: {}]
  %s5 = inlined_call_operand.vmem [shape: f32[1,256], index: 5, kind: input, shape index: {}]
  %s6 = inlined_call_operand.vmem [shape: bf16[256,128], index: 6, kind: input, shape index: {}]
  %s7 = inlined_call_operand.vmem [shape: f32[1,128], index: 7, kind: input, shape index: {}]
  %s8 = inlined_call_operand.hbm [shape: bf16[256,256], index: 8, kind: input, shape index: {}]
  %s9 = inlined_call_operand.vmem [shape: f32[1,256], index: 9, kind: input, shape index: {}]
  %s10 = inlined_call_operand.hbm [shape: bf16[256,128], index: 10, kind: input, shape index: {}]
  %s11 = inlined_call_operand.vmem [shape: f32[1,128], index: 11, kind: input, shape index: {}]
  %s12 = inlined_call_operand.hbm [shape: bf16[128,256], index: 12, kind: input, shape index: {}]
  %s13 = inlined_call_operand.vmem [shape: f32[1,256], index: 13, kind: input, shape index: {}]
  %s14 = inlined_call_operand.hbm [shape: bf16[256,256], index: 14, kind: input, shape index: {}]
  %s15 = inlined_call_operand.vmem [shape: f32[1,256], index: 15, kind: input, shape index: {}]
  %s16 = inlined_call_operand.hbm [shape: bf16[256,128], index: 16, kind: input, shape index: {}]
  %s17 = inlined_call_operand.vmem [shape: f32[1,128], index: 17, kind: input, shape index: {}]
  %s18 = inlined_call_operand.hbm [shape: f32[16,128], index: 18, kind: output, shape index: {0}]
  %s19 = inlined_call_operand.vmem [shape: f32[16,128], index: 19, kind: output, shape index: {1}]
  %s20 = inlined_call_operand.vmem [shape: f32[16,128], index: 20, kind: output, shape index: {2}]
  %21 = xla_tuple %s18, %s19, %s20
  %s22 = sld [smem:[#allocation0]]
  $region126: #{vae_forward.1} parent=0
    _
  %s24 = ssub.s32 1, %s22
  %s25 = scalar_select 0, %s24, %s22
  $region1: #{vae_forward.1} parent=0
    #allocation2 [shape = 'u8[131072]{0}', space=vmem, size = 0x20000, scoped, tag = 'input window, operand 2, single buffered']
    #allocation3 [shape = 's32[1]{0}', space=sflag, size = 0x4, scoped, tag = 'scoped memory for vae_forward.1']
    #allocation4 [shape = 's32[1]{0}', space=sflag, size = 0x4, scoped, tag = 'scoped memory for vae_forward.1']
    #allocation5 [shape = 'u8[131072]{0}', space=vmem, size = 0x20000, scoped, tag = 'input window, operand 4, single buffered']
    #allocation6 [shape = 's32[1]{0}', space=sflag, size = 0x4, scoped, tag = 'scoped memory for vae_forward.1']
    #allocation7 [shape = 'u8[131072]{0}', space=vmem, size = 0x20000, scoped, tag = 'input window, operand 8, single buffered']
    #allocation8 [shape = 'u8[65536]{0}', space=vmem, size = 0x10000, scoped, tag = 'input window, operand 10, single buffered']
    #allocation9 [shape = 's32[1]{0}', space=sflag, size = 0x4, scoped, tag = 'scoped memory for vae_forward.1']
    #allocation10 [shape = 'u8[65536]{0}', space=vmem, size = 0x10000, scoped, tag = 'input window, operand 12, single buffered']
    #allocation11 [shape = 'u8[131072]{0}', space=vmem, size = 0x20000, scoped, tag = 'input window, operand 14, single buffered']
    #allocation12 [shape = 's32[1]{0}', space=sflag, size = 0x4, scoped, tag = 'scoped memory for vae_forward.1']
    #allocation13 [shape = 'u8[65536]{0}', space=vmem, size = 0x10000, scoped, tag = 'input window, operand 16, single buffered']
    #allocation14 [shape = 'u8[8192]{0}', space=vmem, size = 0x2000, scoped, tag = 'output window, operand 0, single buffered']
    %26 = vsyncpa [#allocation3], 0
    %27 = vsyncpa [#allocation6], 0
    %28 = vsyncpa [#allocation9], 0
    %29 = vsyncpa [#allocation12], 0
    %30 = vsyncpa [#allocation4], 0
    // Predicated region
    $region2: #{vae_forward.1} parent=1 // pred_check
      _
    $region3: #{vae_forward.1} parent=1 // pred_check_branch
      %32 = sbr.rel (0) target = $region5
    $region4: #{vae_forward.1} parent=1 // pred_region
      _
    $region5: #{vae_forward.1} parent=1 // pred_fallthru
      _
    // Predicated region
    $region6: #{vae_forward.1} parent=1 // pred_check
      _
    $region7: #{vae_forward.1} parent=1 // pred_check_branch
      %34 = sbr.rel (0) target = $region9
    $region8: #{vae_forward.1} parent=1 // pred_region
      _
    $region9: #{vae_forward.1} parent=1 // pred_fallthru
      _
    // Predicated region
    $region10: #{vae_forward.1} parent=1 // pred_check
      _
    $region11: #{vae_forward.1} parent=1 // pred_check_branch
      %36 = sbr.rel (0) target = $region13
    $region12: #{vae_forward.1} parent=1 // pred_region
      %s38 = ssub.s32 4096, 4096
      %39 = vsyncadd [#allocation3], %s38
      %s40 = sshll.u32 [#allocation2], 4
      %s41 = int_to_ptr.vmem [resolvable:$true] %s40
      %46 = dma.hbm_to_vmem [thread:$0]  %s2, 4096, %s41, [#allocation3], 256, 256, 16
    $region13: #{vae_forward.1} parent=1 // pred_fallthru
      _
    // Predicated region
    $region14: #{vae_forward.1} parent=1 // pred_check
      _
    $region15: #{vae_forward.1} parent=1 // pred_check_branch
      %48 = sbr.rel (0) target = $region17
    $region16: #{vae_forward.1} parent=1 // pred_region
      _
    $region17: #{vae_forward.1} parent=1 // pred_fallthru
      _
    // Predicated region
    $region18: #{vae_forward.1} parent=1 // pred_check
      _
    $region19: #{vae_forward.1} parent=1 // pred_check_branch
      %50 = sbr.rel (0) target = $region21
    $region20: #{vae_forward.1} parent=1 // pred_region
      %s52 = ssub.s32 4096, 4096
      %53 = vsyncadd [#allocation6], %s52
      %s54 = sshll.u32 [#allocation5], 4
      %s55 = int_to_ptr.vmem [resolvable:$true] %s54
      %60 = dma.hbm_to_vmem [thread:$0]  %s4, 4096, %s55, [#allocation6], 128, 128, 8
    $region21: #{vae_forward.1} parent=1 // pred_fallthru
      _
    // Predicated region
    $region22: #{vae_forward.1} parent=1 // pred_check
      _
    $region23: #{vae_forward.1} parent=1 // pred_check_branch
      %62 = sbr.rel (0) target = $region25
    $region24: #{vae_forward.1} parent=1 // pred_region
      _
    $region25: #{vae_forward.1} parent=1 // pred_fallthru
      _
    // Predicated region
    $region26: #{vae_forward.1} parent=1 // pred_check
      _
    $region27: #{vae_forward.1} parent=1 // pred_check_branch
      %64 = sbr.rel (0) target = $region29
    $region28: #{vae_forward.1} parent=1 // pred_region
      _
    $region29: #{vae_forward.1} parent=1 // pred_fallthru
      _
    // Predicated region
    $region30: #{vae_forward.1} parent=1 // pred_check
      _
    $region31: #{vae_forward.1} parent=1 // pred_check_branch
      %66 = sbr.rel (0) target = $region33
    $region32: #{vae_forward.1} parent=1 // pred_region
      _
    $region33: #{vae_forward.1} parent=1 // pred_fallthru
      _
    // Predicated region
    $region34: #{vae_forward.1} parent=1 // pred_check
      _
    $region35: #{vae_forward.1} parent=1 // pred_check_branch
      %68 = sbr.rel (0) target = $region37
    $region36: #{vae_forward.1} parent=1 // pred_region
      %s70 = ssub.s32 4096, 4096
      %71 = vsyncadd [#allocation6], %s70
      %s72 = sshll.u32 [#allocation7], 4
      %s73 = int_to_ptr.vmem [resolvable:$true] %s72
      %78 = dma.hbm_to_vmem [thread:$0]  %s8, 4096, %s73, [#allocation6], 128, 128, 8
    $region37: #{vae_forward.1} parent=1 // pred_fallthru
      _
    // Predicated region
    $region38: #{vae_forward.1} parent=1 // pred_check
      _
    $region39: #{vae_forward.1} parent=1 // pred_check_branch
      %80 = sbr.rel (0) target = $region41
    $region40: #{vae_forward.1} parent=1 // pred_region
      _
    $region41: #{vae_forward.1} parent=1 // pred_fallthru
      _
    // Predicated region
    $region42: #{vae_forward.1} parent=1 // pred_check
      _
    $region43: #{vae_forward.1} parent=1 // pred_check_branch
      %82 = sbr.rel (0) target = $region45
    $region44: #{vae_forward.1} parent=1 // pred_region
      %s84 = ssub.s32 2048, 2048
      %85 = vsyncadd [#allocation9], %s84
      %s86 = sshll.u32 [#allocation8], 4
      %s87 = int_to_ptr.vmem [resolvable:$true] %s86
      %92 = dma.hbm_to_vmem [thread:$0]  %s10, 2048, %s87, [#allocation9], 64, 64, 4
    $region45: #{vae_forward.1} parent=1 // pred_fallthru
      _
    // Predicated region
    $region46: #{vae_forward.1} parent=1 // pred_check
      _
    $region47: #{vae_forward.1} parent=1 // pred_check_branch
      %94 = sbr.rel (0) target = $region49
    $region48: #{vae_forward.1} parent=1 // pred_region
      _
    $region49: #{vae_forward.1} parent=1 // pred_fallthru
      _
    // Predicated region
    $region50: #{vae_forward.1} parent=1 // pred_check
      _
    $region51: #{vae_forward.1} parent=1 // pred_check_branch
      %96 = sbr.rel (0) target = $region53
    $region52: #{vae_forward.1} parent=1 // pred_region
      %s98 = ssub.s32 2048, 2048
      %99 = vsyncadd [#allocation9], %s98
      %s100 = sshll.u32 [#allocation10], 4
      %s101 = int_to_ptr.vmem [resolvable:$true] %s100
      %106 = dma.hbm_to_vmem [thread:$0]  %s12, 2048, %s101, [#allocation9], 128, 128, 8
    $region53: #{vae_forward.1} parent=1 // pred_fallthru
      _
    // Predicated region
    $region54: #{vae_forward.1} parent=1 // pred_check
      _
    $region55: #{vae_forward.1} parent=1 // pred_check_branch
      %108 = sbr.rel (0) target = $region57
    $region56: #{vae_forward.1} parent=1 // pred_region
      _
    $region57: #{vae_forward.1} parent=1 // pred_fallthru
      _
    // Predicated region
    $region58: #{vae_forward.1} parent=1 // pred_check
      _
    $region59: #{vae_forward.1} parent=1 // pred_check_branch
      %110 = sbr.rel (0) target = $region61
    $region60: #{vae_forward.1} parent=1 // pred_region
      %s112 = ssub.s32 4096, 4096
      %113 = vsyncadd [#allocation12], %s112
      %s114 = sshll.u32 [#allocation11], 4
      %s115 = int_to_ptr.vmem [resolvable:$true] %s114
      %120 = dma.hbm_to_vmem [thread:$0]  %s14, 4096, %s115, [#allocation12], 128, 128, 8
    $region61: #{vae_forward.1} parent=1 // pred_fallthru
      _
    // Predicated region
    $region62: #{vae_forward.1} parent=1 // pred_check
      _
    $region63: #{vae_forward.1} parent=1 // pred_check_branch
      %122 = sbr.rel (0) target = $region65
    $region64: #{vae_forward.1} parent=1 // pred_region
      _
    $region65: #{vae_forward.1} parent=1 // pred_fallthru
      _
    // Predicated region
    $region66: #{vae_forward.1} parent=1 // pred_check
      _
    $region67: #{vae_forward.1} parent=1 // pred_check_branch
      %124 = sbr.rel (0) target = $region69
    $region68: #{vae_forward.1} parent=1 // pred_region
      %s126 = ssub.s32 2048, 2048
      %127 = vsyncadd [#allocation12], %s126
      %s128 = sshll.u32 [#allocation13], 4
      %s129 = int_to_ptr.vmem [resolvable:$true] %s128
      %134 = dma.hbm_to_vmem [thread:$0]  %s16, 2048, %s129, [#allocation12], 64, 64, 4
    $region69: #{vae_forward.1} parent=1 // pred_fallthru
      _
    // Predicated region
    $region70: #{vae_forward.1} parent=1 // pred_check
      _
    $region71: #{vae_forward.1} parent=1 // pred_check_branch
      %136 = sbr.rel (0) target = $region73
    $region72: #{vae_forward.1} parent=1 // pred_region
      _
    $region73: #{vae_forward.1} parent=1 // pred_fallthru
      _
    // Predicated region
    $region74: #{vae_forward.1} parent=1 // pred_check
      _
    $region75: #{vae_forward.1} parent=1 // pred_check_branch
      %138 = sbr.rel (0) target = $region77
    $region76: #{vae_forward.1} parent=1 // pred_region
      %139 = dma.done [#allocation3], 4096
    $region77: #{vae_forward.1} parent=1 // pred_fallthru
      _
    // Predicated region
    $region78: #{vae_forward.1} parent=1 // pred_check
      _
    $region79: #{vae_forward.1} parent=1 // pred_check_branch
      %141 = sbr.rel (0) target = $region81
    $region80: #{vae_forward.1} parent=1 // pred_region
      %142 = dma.done [#allocation6], 4096
    $region81: #{vae_forward.1} parent=1 // pred_fallthru
      _
    // Predicated region
    $region82: #{vae_forward.1} parent=1 // pred_check
      _
    $region83: #{vae_forward.1} parent=1 // pred_check_branch
      %144 = sbr.rel (0) target = $region85
    $region84: #{vae_forward.1} parent=1 // pred_region
      %145 = dma.done [#allocation6], 4096
    $region85: #{vae_forward.1} parent=1 // pred_fallthru
      _
    // Predicated region
    $region86: #{vae_forward.1} parent=1 // pred_check
      _
    $region87: #{vae_forward.1} parent=1 // pred_check_branch
      %147 = sbr.rel (0) target = $region89
    $region88: #{vae_forward.1} parent=1 // pred_region
      %148 = dma.done [#allocation9], 2048
    $region89: #{vae_forward.1} parent=1 // pred_fallthru
      _
    // Predicated region
    $region90: #{vae_forward.1} parent=1 // pred_check
      _
    $region91: #{vae_forward.1} parent=1 // pred_check_branch
      %150 = sbr.rel (0) target = $region93
    $region92: #{vae_forward.1} parent=1 // pred_region
      %151 = dma.done [#allocation9], 2048
    $region93: #{vae_forward.1} parent=1 // pred_fallthru
      _
    // Predicated region
    $region94: #{vae_forward.1} parent=1 // pred_check
      _
    $region95: #{vae_forward.1} parent=1 // pred_check_branch
      %153 = sbr.rel (0) target = $region97
    $region96: #{vae_forward.1} parent=1 // pred_region
      %154 = dma.done [#allocation12], 4096
    $region97: #{vae_forward.1} parent=1 // pred_fallthru
      _
    // Predicated region
    $region98: #{vae_forward.1} parent=1 // pred_check
      _
    $region99: #{vae_forward.1} parent=1 // pred_check_branch
      %156 = sbr.rel (0) target = $region101
    $region100: #{vae_forward.1} parent=1 // pred_region
      %157 = dma.done [#allocation12], 2048
    $region101: #{vae_forward.1} parent=1 // pred_fallthru
      _
    %v159 = vld [vmem:[%s0] sm:$0xf]
    %v160 = vld [vmem:[%s0 + $0x4] sm:$0xf]
    %v161 = vld [vmem:[#allocation2] sm:$0xff]
    %v162 = vld [vmem:[#allocation2 + $0x8] sm:$0xff]
    %v163 = vld [vmem:[#allocation2 + $0x10] sm:$0xff]
    %v164 = vld [vmem:[#allocation2 + $0x18] sm:$0xff]
    %v165 = vld [vmem:[#allocation2 + $0x20] sm:$0xff]
    %v166 = vld [vmem:[#allocation2 + $0x28] sm:$0xff]
    %v167 = vld [vmem:[#allocation2 + $0x30] sm:$0xff]
    %v168 = vld [vmem:[#allocation2 + $0x38] sm:$0xff]
    %v169 = vld [vmem:[#allocation2 + $0x40] sm:$0xff]
    %v170 = vld [vmem:[#allocation2 + $0x48] sm:$0xff]
    %v171 = vld [vmem:[#allocation2 + $0x50] sm:$0xff]
    %v172 = vld [vmem:[#allocation2 + $0x58] sm:$0xff]
    %v173 = vld [vmem:[#allocation2 + $0x60] sm:$0xff]
    %v174 = vld [vmem:[#allocation2 + $0x68] sm:$0xff]
    %v175 = vld [vmem:[#allocation2 + $0x70] sm:$0xff]
    %v176 = vld [vmem:[#allocation2 + $0x78] sm:$0xff]
    %v177 = vld [vmem:[#allocation2 + $0x80] sm:$0xff]
    %v178 = vld [vmem:[#allocation2 + $0x88] sm:$0xff]
    %v179 = vld [vmem:[#allocation2 + $0x90] sm:$0xff]
    %v180 = vld [vmem:[#allocation2 + $0x98] sm:$0xff]
    %v181 = vld [vmem:[#allocation2 + $0xa0] sm:$0xff]
    %v182 = vld [vmem:[#allocation2 + $0xa8] sm:$0xff]
    %v183 = vld [vmem:[#allocation2 + $0xb0] sm:$0xff]
    %v184 = vld [vmem:[#allocation2 + $0xb8] sm:$0xff]
    %v185 = vld [vmem:[#allocation2 + $0xc0] sm:$0xff]
    %v186 = vld [vmem:[#allocation2 + $0xc8] sm:$0xff]
    %v187 = vld [vmem:[#allocation2 + $0xd0] sm:$0xff]
    %v188 = vld [vmem:[#allocation2 + $0xd8] sm:$0xff]
    %v189 = vld [vmem:[#allocation2 + $0xe0] sm:$0xff]
    %v190 = vld [vmem:[#allocation2 + $0xe8] sm:$0xff]
    %v191 = vld [vmem:[#allocation2 + $0xf0] sm:$0xff]
    %v192 = vld [vmem:[#allocation2 + $0xf8] sm:$0xff]
    %v193 = vld [vmem:[%s3] sm:$0xf]
    %v195 = vlaneseq
    %v196 = vshrl.u32 %v195, 7
    %v197 = vsub.s32 0, %v196
    %v198 = vrot.slane %v193, %v197
    %v199 = vlaneseq
    %v200 = vshrl.u32 %v199, 7
    %v201 = vsub.s32 1, %v200
    %v202 = vrot.slane %v193, %v201
    %v203 = vlaneseq
    %v204 = vshrl.u32 %v203, 7
    %v205 = vsub.s32 2, %v204
    %v206 = vrot.slane %v193, %v205
    %v207 = vlaneseq
    %v208 = vshrl.u32 %v207, 7
    %v209 = vsub.s32 3, %v208
    %v210 = vrot.slane %v193, %v209
    %v217 = vunpack.c.l.b16 %v159
    %v218 = vunpack.c.l.b16 %v160
    %v219 = vpack.c.b16 %v218, %v217
    %v253 = vunpack.c.l.b16 %v161
    %v254 = vunpack.c.h.b16 %v161
    %v255 = vunpack.c.l.b16 %v162
    %v256 = vunpack.c.h.b16 %v162
    %v257 = vunpack.c.l.b16 %v163
    %v258 = vunpack.c.h.b16 %v163
    %v259 = vunpack.c.l.b16 %v164
    %v260 = vunpack.c.h.b16 %v164
    %v261 = vunpack.c.l.b16 %v165
    %v262 = vunpack.c.h.b16 %v165
    %v263 = vunpack.c.l.b16 %v166
    %v264 = vunpack.c.h.b16 %v166
    %v265 = vunpack.c.l.b16 %v167
    %v266 = vunpack.c.h.b16 %v167
    %v267 = vunpack.c.l.b16 %v168
    %v268 = vunpack.c.h.b16 %v168
    %v269 = vunpack.c.l.b16 %v169
    %v270 = vunpack.c.h.b16 %v169
    %v271 = vunpack.c.l.b16 %v170
    %v272 = vunpack.c.h.b16 %v170
    %v273 = vunpack.c.l.b16 %v171
    %v274 = vunpack.c.h.b16 %v171
    %v275 = vunpack.c.l.b16 %v172
    %v276 = vunpack.c.h.b16 %v172
    %v277 = vunpack.c.l.b16 %v173
    %v278 = vunpack.c.h.b16 %v173
    %v279 = vunpack.c.l.b16 %v174
    %v280 = vunpack.c.h.b16 %v174
    %v281 = vunpack.c.l.b16 %v175
    %v282 = vunpack.c.h.b16 %v175
    %v283 = vunpack.c.l.b16 %v176
    %v284 = vunpack.c.h.b16 %v176
    %v285 = vunpack.c.l.b16 %v177
    %v286 = vunpack.c.h.b16 %v177
    %v287 = vunpack.c.l.b16 %v178
    %v288 = vunpack.c.h.b16 %v178
    %v289 = vunpack.c.l.b16 %v179
    %v290 = vunpack.c.h.b16 %v179
    %v291 = vunpack.c.l.b16 %v180
    %v292 = vunpack.c.h.b16 %v180
    %v293 = vunpack.c.l.b16 %v181
    %v294 = vunpack.c.h.b16 %v181
    %v295 = vunpack.c.l.b16 %v182
    %v296 = vunpack.c.h.b16 %v182
    %v297 = vunpack.c.l.b16 %v183
    %v298 = vunpack.c.h.b16 %v183
    %v299 = vunpack.c.l.b16 %v184
    %v300 = vunpack.c.h.b16 %v184
    %v301 = vunpack.c.l.b16 %v185
    %v302 = vunpack.c.h.b16 %v185
    %v303 = vunpack.c.l.b16 %v186
    %v304 = vunpack.c.h.b16 %v186
    %v305 = vunpack.c.l.b16 %v187
    %v306 = vunpack.c.h.b16 %v187
    %v307 = vunpack.c.l.b16 %v188
    %v308 = vunpack.c.h.b16 %v188
    %v309 = vunpack.c.l.b16 %v189
    %v310 = vunpack.c.h.b16 %v189
    %v311 = vunpack.c.l.b16 %v190
    %v312 = vunpack.c.h.b16 %v190
    %v313 = vunpack.c.l.b16 %v191
    %v314 = vunpack.c.h.b16 %v191
    %v315 = vunpack.c.l.b16 %v192
    %v316 = vunpack.c.h.b16 %v192
    %v317 = vpack.c.b16 %v257, %v253
    %v318 = vpack.c.b16 %v258, %v254
    %v319 = vpack.c.b16 %v259, %v255
    %v320 = vpack.c.b16 %v260, %v256
    %v321 = vpack.c.b16 %v265, %v261
    %v322 = vpack.c.b16 %v266, %v262
    %v323 = vpack.c.b16 %v267, %v263
    %v324 = vpack.c.b16 %v268, %v264
    %v325 = vpack.c.b16 %v273, %v269
    %v326 = vpack.c.b16 %v274, %v270
    %v327 = vpack.c.b16 %v275, %v271
    %v328 = vpack.c.b16 %v276, %v272
    %v329 = vpack.c.b16 %v281, %v277
    %v330 = vpack.c.b16 %v282, %v278
    %v331 = vpack.c.b16 %v283, %v279
    %v332 = vpack.c.b16 %v284, %v280
    %v333 = vpack.c.b16 %v289, %v285
    %v334 = vpack.c.b16 %v290, %v286
    %v335 = vpack.c.b16 %v291, %v287
    %v336 = vpack.c.b16 %v292, %v288
    %v337 = vpack.c.b16 %v297, %v293
    %v338 = vpack.c.b16 %v298, %v294
    %v339 = vpack.c.b16 %v299, %v295
    %v340 = vpack.c.b16 %v300, %v296
    %v341 = vpack.c.b16 %v305, %v301
    %v342 = vpack.c.b16 %v306, %v302
    %v343 = vpack.c.b16 %v307, %v303
    %v344 = vpack.c.b16 %v308, %v304
    %v345 = vpack.c.b16 %v313, %v309
    %v346 = vpack.c.b16 %v314, %v310
    %v347 = vpack.c.b16 %v315, %v311
    %v348 = vpack.c.b16 %v316, %v312
    %381 = vmatprep.subr.bf16.mxu0 %v318
    %382 = vmatpush1.bf16.msra.mxu0 %v317
    %383 = vmatprep.subr.bf16.mxu0 %v322
    %384 = vmatpush1.bf16.msra.mxu0 %v321
    %385 = vmatprep.subr.bf16.mxu0 %v326
    %386 = vmatpush1.bf16.msra.mxu0 %v325
    %387 = vmatprep.subr.bf16.mxu0 %v330
    %388 = vmatpush1.bf16.msra.mxu0 %v329
    %389 = vmatprep.subr.bf16.mxu0 %v334
    %390 = vmatpush1.bf16.msra.mxu0 %v333
    %391 = vmatprep.subr.bf16.mxu0 %v338
    %392 = vmatpush1.bf16.msra.mxu0 %v337
    %393 = vmatprep.subr.bf16.mxu0 %v342
    %394 = vmatpush1.bf16.msra.mxu0 %v341
    %395 = vmatprep.subr.bf16.mxu0 %v346
    %396 = vmatpush1.bf16.msra.mxu0 %v345
    %397 = vmatprep.subr.bf16.mxu0 0
    %398 = vmatpush1.bf16.msra.mxu0 0
    %399 = vmatprep.subr.bf16.mxu0 0
    %400 = vmatpush1.bf16.msra.mxu0 0
    %401 = vmatprep.subr.bf16.mxu0 0
    %402 = vmatpush1.bf16.msra.mxu0 0
    %403 = vmatprep.subr.bf16.mxu0 0
    %404 = vmatpush1.bf16.msra.mxu0 0
    %405 = vmatprep.subr.bf16.mxu0 0
    %406 = vmatpush1.bf16.msra.mxu0 0
    %407 = vmatprep.subr.bf16.mxu0 0
    %408 = vmatpush1.bf16.msra.mxu0 0
    %409 = vmatprep.subr.bf16.mxu0 0
    %410 = vmatpush1.bf16.msra.mxu0 0
    %411 = vmatprep.subr.bf16.mxu0 0
    %412 = vmatpush1.bf16.msra.mxu0 0
    %413 = vmatprep.mubr.bf16.mxu0 0
    %414 = vmatmul.mubr.bf16.gmra.mrb[0].mxu0 %v219
    %v415 = vpop.f32.mrb[0].mxu0
    %v416 = vadd.f32 %v198, %v415
    %v417 = vpop.f32.mrb[0].mxu0
    %v418 = vadd.f32 %v202, %v417
    %v419 = vpop.f32.mrb[0].mxu0
    %v420 = vadd.f32 %v198, %v419
    %v421 = vpop.f32.mrb[0].mxu0
    %v422 = vadd.f32 %v202, %v421
    %423 = vdwg.mxu0
    %424 = vmatprep.subr.bf16.mxu0 %v320
    %425 = vmatpush1.bf16.msra.mxu0 %v319
    %426 = vmatprep.subr.bf16.mxu0 %v324
    %427 = vmatpush1.bf16.msra.mxu0 %v323
    %428 = vmatprep.subr.bf16.mxu0 %v328
    %429 = vmatpush1.bf16.msra.mxu0 %v327
    %430 = vmatprep.subr.bf16.mxu0 %v332
    %431 = vmatpush1.bf16.msra.mxu0 %v331
    %432 = vmatprep.subr.bf16.mxu0 %v336
    %433 = vmatpush1.bf16.msra.mxu0 %v335
    %434 = vmatprep.subr.bf16.mxu0 %v340
    %435 = vmatpush1.bf16.msra.mxu0 %v339
    %436 = vmatprep.subr.bf16.mxu0 %v344
    %437 = vmatpush1.bf16.msra.mxu0 %v343
    %438 = vmatprep.subr.bf16.mxu0 %v348
    %439 = vmatpush1.bf16.msra.mxu0 %v347
    %440 = vmatprep.subr.bf16.mxu0 0
    %441 = vmatpush1.bf16.msra.mxu0 0
    %442 = vmatprep.subr.bf16.mxu0 0
    %443 = vmatpush1.bf16.msra.mxu0 0
    %444 = vmatprep.subr.bf16.mxu0 0
    %445 = vmatpush1.bf16.msra.mxu0 0
    %446 = vmatprep.subr.bf16.mxu0 0
    %447 = vmatpush1.bf16.msra.mxu0 0
    %448 = vmatprep.subr.bf16.mxu0 0
    %449 = vmatpush1.bf16.msra.mxu0 0
    %450 = vmatprep.subr.bf16.mxu0 0
    %451 = vmatpush1.bf16.msra.mxu0 0
    %452 = vmatprep.subr.bf16.mxu0 0
    %453 = vmatpush1.bf16.msra.mxu0 0
    %454 = vmatprep.subr.bf16.mxu0 0
    %455 = vmatpush1.bf16.msra.mxu0 0
    %456 = vmatprep.mubr.bf16.mxu0 0
    %457 = vmatmul.mubr.bf16.gmra.mrb[0].mxu0 %v219
    %v458 = vpop.f32.mrb[0].mxu0
    %v459 = vadd.f32 %v206, %v458
    %v460 = vpop.f32.mrb[0].mxu0
    %v461 = vadd.f32 %v210, %v460
    %v462 = vpop.f32.mrb[0].mxu0
    %v463 = vadd.f32 %v206, %v462
    %v464 = vpop.f32.mrb[0].mxu0
    %v465 = vadd.f32 %v210, %v464
    %466 = vdwg.mxu0
    %v467 = vmax.f32 %v416, 0.0
    %v468 = vmax.f32 %v418, 0.0
    %v469 = vmax.f32 %v459, 0.0
    %v470 = vmax.f32 %v461, 0.0
    %v471 = vmax.f32 %v420, 0.0
    %v472 = vmax.f32 %v422, 0.0
    %v473 = vmax.f32 %v463, 0.0
    %v474 = vmax.f32 %v465, 0.0
    %v475 = vpack.c.bf16 %v471, %v467
    %v476 = vpack.c.bf16 %v472, %v468
    %v477 = vpack.c.bf16 %v473, %v469
    %v478 = vpack.c.bf16 %v474, %v470
    %v479 = vld [vmem:[#allocation5] sm:$0xff]
    %v480 = vld [vmem:[#allocation5 + $0x8] sm:$0xff]
    %v481 = vld [vmem:[#allocation5 + $0x10] sm:$0xff]
    %v482 = vld [vmem:[#allocation5 + $0x18] sm:$0xff]
    %v483 = vld [vmem:[#allocation5 + $0x20] sm:$0xff]
    %v484 = vld [vmem:[#allocation5 + $0x28] sm:$0xff]
    %v485 = vld [vmem:[#allocation5 + $0x30] sm:$0xff]
    %v486 = vld [vmem:[#allocation5 + $0x38] sm:$0xff]
    %v487 = vld [vmem:[#allocation5 + $0x40] sm:$0xff]
    %v488 = vld [vmem:[#allocation5 + $0x48] sm:$0xff]
    %v489 = vld [vmem:[#allocation5 + $0x50] sm:$0xff]
    %v490 = vld [vmem:[#allocation5 + $0x58] sm:$0xff]
    %v491 = vld [vmem:[#allocation5 + $0x60] sm:$0xff]
    %v492 = vld [vmem:[#allocation5 + $0x68] sm:$0xff]
    %v493 = vld [vmem:[#allocation5 + $0x70] sm:$0xff]
    %v494 = vld [vmem:[#allocation5 + $0x78] sm:$0xff]
    %v495 = vld [vmem:[#allocation5 + $0x80] sm:$0xff]
    %v496 = vld [vmem:[#allocation5 + $0x88] sm:$0xff]
    %v497 = vld [vmem:[#allocation5 + $0x90] sm:$0xff]
    %v498 = vld [vmem:[#allocation5 + $0x98] sm:$0xff]
    %v499 = vld [vmem:[#allocation5 + $0xa0] sm:$0xff]
    %v500 = vld [vmem:[#allocation5 + $0xa8] sm:$0xff]
    %v501 = vld [vmem:[#allocation5 + $0xb0] sm:$0xff]
    %v502 = vld [vmem:[#allocation5 + $0xb8] sm:$0xff]
    %v503 = vld [vmem:[#allocation5 + $0xc0] sm:$0xff]
    %v504 = vld [vmem:[#allocation5 + $0xc8] sm:$0xff]
    %v505 = vld [vmem:[#allocation5 + $0xd0] sm:$0xff]
    %v506 = vld [vmem:[#allocation5 + $0xd8] sm:$0xff]
    %v507 = vld [vmem:[#allocation5 + $0xe0] sm:$0xff]
    %v508 = vld [vmem:[#allocation5 + $0xe8] sm:$0xff]
    %v509 = vld [vmem:[#allocation5 + $0xf0] sm:$0xff]
    %v510 = vld [vmem:[#allocation5 + $0xf8] sm:$0xff]
    %v511 = vld [vmem:[%s5] sm:$0x3]
    %v513 = vlaneseq
    %v514 = vshrl.u32 %v513, 7
    %v515 = vsub.s32 0, %v514
    %v516 = vrot.slane %v511, %v515
    %v517 = vlaneseq
    %v518 = vshrl.u32 %v517, 7
    %v519 = vsub.s32 1, %v518
    %v520 = vrot.slane %v511, %v519
    %v555 = vunpack.c.l.b16 %v479
    %v556 = vunpack.c.h.b16 %v479
    %v557 = vunpack.c.l.b16 %v480
    %v558 = vunpack.c.h.b16 %v480
    %v559 = vunpack.c.l.b16 %v481
    %v560 = vunpack.c.h.b16 %v481
    %v561 = vunpack.c.l.b16 %v482
    %v562 = vunpack.c.h.b16 %v482
    %v563 = vunpack.c.l.b16 %v483
    %v564 = vunpack.c.h.b16 %v483
    %v565 = vunpack.c.l.b16 %v484
    %v566 = vunpack.c.h.b16 %v484
    %v567 = vunpack.c.l.b16 %v485
    %v568 = vunpack.c.h.b16 %v485
    %v569 = vunpack.c.l.b16 %v486
    %v570 = vunpack.c.h.b16 %v486
    %v571 = vunpack.c.l.b16 %v487
    %v572 = vunpack.c.h.b16 %v487
    %v573 = vunpack.c.l.b16 %v488
    %v574 = vunpack.c.h.b16 %v488
    %v575 = vunpack.c.l.b16 %v489
    %v576 = vunpack.c.h.b16 %v489
    %v577 = vunpack.c.l.b16 %v490
    %v578 = vunpack.c.h.b16 %v490
    %v579 = vunpack.c.l.b16 %v491
    %v580 = vunpack.c.h.b16 %v491
    %v581 = vunpack.c.l.b16 %v492
    %v582 = vunpack.c.h.b16 %v492
    %v583 = vunpack.c.l.b16 %v493
    %v584 = vunpack.c.h.b16 %v493
    %v585 = vunpack.c.l.b16 %v494
    %v586 = vunpack.c.h.b16 %v494
    %v587 = vunpack.c.l.b16 %v495
    %v588 = vunpack.c.h.b16 %v495
    %v589 = vunpack.c.l.b16 %v496
    %v590 = vunpack.c.h.b16 %v496
    %v591 = vunpack.c.l.b16 %v497
    %v592 = vunpack.c.h.b16 %v497
    %v593 = vunpack.c.l.b16 %v498
    %v594 = vunpack.c.h.b16 %v498
    %v595 = vunpack.c.l.b16 %v499
    %v596 = vunpack.c.h.b16 %v499
    %v597 = vunpack.c.l.b16 %v500
    %v598 = vunpack.c.h.b16 %v500
    %v599 = vunpack.c.l.b16 %v501
    %v600 = vunpack.c.h.b16 %v501
    %v601 = vunpack.c.l.b16 %v502
    %v602 = vunpack.c.h.b16 %v502
    %v603 = vunpack.c.l.b16 %v503
    %v604 = vunpack.c.h.b16 %v503
    %v605 = vunpack.c.l.b16 %v504
    %v606 = vunpack.c.h.b16 %v504
    %v607 = vunpack.c.l.b16 %v505
    %v608 = vunpack.c.h.b16 %v505
    %v609 = vunpack.c.l.b16 %v506
    %v610 = vunpack.c.h.b16 %v506
    %v611 = vunpack.c.l.b16 %v507
    %v612 = vunpack.c.h.b16 %v507
    %v613 = vunpack.c.l.b16 %v508
    %v614 = vunpack.c.h.b16 %v508
    %v615 = vunpack.c.l.b16 %v509
    %v616 = vunpack.c.h.b16 %v509
    %v617 = vunpack.c.l.b16 %v510
    %v618 = vunpack.c.h.b16 %v510
    %v619 = vpack.c.b16 %v557, %v555
    %v620 = vpack.c.b16 %v558, %v556
    %v621 = vpack.c.b16 %v561, %v559
    %v622 = vpack.c.b16 %v562, %v560
    %v623 = vpack.c.b16 %v565, %v563
    %v624 = vpack.c.b16 %v566, %v564
    %v625 = vpack.c.b16 %v569, %v567
    %v626 = vpack.c.b16 %v570, %v568
    %v627 = vpack.c.b16 %v573, %v571
    %v628 = vpack.c.b16 %v574, %v572
    %v629 = vpack.c.b16 %v577, %v575
    %v630 = vpack.c.b16 %v578, %v576
    %v631 = vpack.c.b16 %v581, %v579
    %v632 = vpack.c.b16 %v582, %v580
    %v633 = vpack.c.b16 %v585, %v583
    %v634 = vpack.c.b16 %v586, %v584
    %v635 = vpack.c.b16 %v589, %v587
    %v636 = vpack.c.b16 %v590, %v588
    %v637 = vpack.c.b16 %v593, %v591
    %v638 = vpack.c.b16 %v594, %v592
    %v639 = vpack.c.b16 %v597, %v595
    %v640 = vpack.c.b16 %v598, %v596
    %v641 = vpack.c.b16 %v601, %v599
    %v642 = vpack.c.b16 %v602, %v600
    %v643 = vpack.c.b16 %v605, %v603
    %v644 = vpack.c.b16 %v606, %v604
    %v645 = vpack.c.b16 %v609, %v607
    %v646 = vpack.c.b16 %v610, %v608
    %v647 = vpack.c.b16 %v613, %v611
    %v648 = vpack.c.b16 %v614, %v612
    %v649 = vpack.c.b16 %v617, %v615
    %v650 = vpack.c.b16 %v618, %v616
    %683 = vmatprep.subr.bf16.mxu0 %v620
    %684 = vmatpush1.bf16.msra.mxu0 %v619
    %685 = vmatprep.subr.bf16.mxu0 %v622
    %686 = vmatpush1.bf16.msra.mxu0 %v621
    %687 = vmatprep.subr.bf16.mxu0 %v624
    %688 = vmatpush1.bf16.msra.mxu0 %v623
    %689 = vmatprep.subr.bf16.mxu0 %v626
    %690 = vmatpush1.bf16.msra.mxu0 %v625
    %691 = vmatprep.subr.bf16.mxu0 %v628
    %692 = vmatpush1.bf16.msra.mxu0 %v627
    %693 = vmatprep.subr.bf16.mxu0 %v630
    %694 = vmatpush1.bf16.msra.mxu0 %v629
    %695 = vmatprep.subr.bf16.mxu0 %v632
    %696 = vmatpush1.bf16.msra.mxu0 %v631
    %697 = vmatprep.subr.bf16.mxu0 %v634
    %698 = vmatpush1.bf16.msra.mxu0 %v633
    %699 = vmatprep.subr.bf16.mxu0 %v636
    %700 = vmatpush1.bf16.msra.mxu0 %v635
    %701 = vmatprep.subr.bf16.mxu0 %v638
    %702 = vmatpush1.bf16.msra.mxu0 %v637
    %703 = vmatprep.subr.bf16.mxu0 %v640
    %704 = vmatpush1.bf16.msra.mxu0 %v639
    %705 = vmatprep.subr.bf16.mxu0 %v642
    %706 = vmatpush1.bf16.msra.mxu0 %v641
    %707 = vmatprep.subr.bf16.mxu0 %v644
    %708 = vmatpush1.bf16.msra.mxu0 %v643
    %709 = vmatprep.subr.bf16.mxu0 %v646
    %710 = vmatpush1.bf16.msra.mxu0 %v645
    %711 = vmatprep.subr.bf16.mxu0 %v648
    %712 = vmatpush1.bf16.msra.mxu0 %v647
    %713 = vmatprep.subr.bf16.mxu0 %v650
    %714 = vmatpush1.bf16.msra.mxu0 %v649
    %715 = vmatprep.mubr.bf16.mxu0 %v476
    %716 = vmatmul.mubr.bf16.gmra.mrb[0].mxu0 %v475
    %v717 = vpop.f32.mrb[0].mxu0
    %v718 = vadd.f32 %v516, %v717
    %v719 = vpop.f32.mrb[0].mxu0
    %v720 = vadd.f32 %v520, %v719
    %v721 = vpop.f32.mrb[0].mxu0
    %v722 = vadd.f32 %v516, %v721
    %v723 = vpop.f32.mrb[0].mxu0
    %v724 = vadd.f32 %v520, %v723
    %725 = vdwg.mxu0
    %v726 = vmax.f32 %v718, 0.0
    %v727 = vmax.f32 %v720, 0.0
    %v728 = vmax.f32 %v722, 0.0
    %v729 = vmax.f32 %v724, 0.0
    %v730 = vpack.c.bf16 %v728, %v726
    %v731 = vpack.c.bf16 %v729, %v727
    %v732 = vld [vmem:[%s6] sm:$0xf]
    %v733 = vld [vmem:[%s6 + $0x4] sm:$0xf]
    %v734 = vld [vmem:[%s6 + $0x8] sm:$0xf]
    %v735 = vld [vmem:[%s6 + $0xc] sm:$0xf]
    %v736 = vld [vmem:[%s6 + $0x10] sm:$0xf]
    %v737 = vld [vmem:[%s6 + $0x14] sm:$0xf]
    %v738 = vld [vmem:[%s6 + $0x18] sm:$0xf]
    %v739 = vld [vmem:[%s6 + $0x1c] sm:$0xf]
    %v740 = vld [vmem:[%s6 + $0x20] sm:$0xf]
    %v741 = vld [vmem:[%s6 + $0x24] sm:$0xf]
    %v742 = vld [vmem:[%s6 + $0x28] sm:$0xf]
    %v743 = vld [vmem:[%s6 + $0x2c] sm:$0xf]
    %v744 = vld [vmem:[%s6 + $0x30] sm:$0xf]
    %v745 = vld [vmem:[%s6 + $0x34] sm:$0xf]
    %v746 = vld [vmem:[%s6 + $0x38] sm:$0xf]
    %v747 = vld [vmem:[%s6 + $0x3c] sm:$0xf]
    %v748 = vld [vmem:[%s6 + $0x40] sm:$0xf]
    %v749 = vld [vmem:[%s6 + $0x44] sm:$0xf]
    %v750 = vld [vmem:[%s6 + $0x48] sm:$0xf]
    %v751 = vld [vmem:[%s6 + $0x4c] sm:$0xf]
    %v752 = vld [vmem:[%s6 + $0x50] sm:$0xf]
    %v753 = vld [vmem:[%s6 + $0x54] sm:$0xf]
    %v754 = vld [vmem:[%s6 + $0x58] sm:$0xf]
    %v755 = vld [vmem:[%s6 + $0x5c] sm:$0xf]
    %v756 = vld [vmem:[%s6 + $0x60] sm:$0xf]
    %v757 = vld [vmem:[%s6 + $0x64] sm:$0xf]
    %v758 = vld [vmem:[%s6 + $0x68] sm:$0xf]
    %v759 = vld [vmem:[%s6 + $0x6c] sm:$0xf]
    %v760 = vld [vmem:[%s6 + $0x70] sm:$0xf]
    %v761 = vld [vmem:[%s6 + $0x74] sm:$0xf]
    %v762 = vld [vmem:[%s6 + $0x78] sm:$0xf]
    %v763 = vld [vmem:[%s6 + $0x7c] sm:$0xf]
    %v764 = vld [vmem:[%s7] sm:$0x1]
    %v766 = vlaneseq
    %v767 = vshrl.u32 %v766, 7
    %v768 = vsub.s32 0, %v767
    %v769 = vrot.slane %v764, %v768
    %v803 = vunpack.c.l.b16 %v732
    %v804 = vunpack.c.l.b16 %v733
    %v805 = vunpack.c.l.b16 %v734
    %v806 = vunpack.c.l.b16 %v735
    %v807 = vunpack.c.l.b16 %v736
    %v808 = vunpack.c.l.b16 %v737
    %v809 = vunpack.c.l.b16 %v738
    %v810 = vunpack.c.l.b16 %v739
    %v811 = vunpack.c.l.b16 %v740
    %v812 = vunpack.c.l.b16 %v741
    %v813 = vunpack.c.l.b16 %v742
    %v814 = vunpack.c.l.b16 %v743
    %v815 = vunpack.c.l.b16 %v744
    %v816 = vunpack.c.l.b16 %v745
    %v817 = vunpack.c.l.b16 %v746
    %v818 = vunpack.c.l.b16 %v747
    %v819 = vunpack.c.l.b16 %v748
    %v820 = vunpack.c.l.b16 %v749
    %v821 = vunpack.c.l.b16 %v750
    %v822 = vunpack.c.l.b16 %v751
    %v823 = vunpack.c.l.b16 %v752
    %v824 = vunpack.c.l.b16 %v753
    %v825 = vunpack.c.l.b16 %v754
    %v826 = vunpack.c.l.b16 %v755
    %v827 = vunpack.c.l.b16 %v756
    %v828 = vunpack.c.l.b16 %v757
    %v829 = vunpack.c.l.b16 %v758
    %v830 = vunpack.c.l.b16 %v759
    %v831 = vunpack.c.l.b16 %v760
    %v832 = vunpack.c.l.b16 %v761
    %v833 = vunpack.c.l.b16 %v762
    %v834 = vunpack.c.l.b16 %v763
    %v835 = vpack.c.b16 %v804, %v803
    %v836 = vpack.c.b16 %v806, %v805
    %v837 = vpack.c.b16 %v808, %v807
    %v838 = vpack.c.b16 %v810, %v809
    %v839 = vpack.c.b16 %v812, %v811
    %v840 = vpack.c.b16 %v814, %v813
    %v841 = vpack.c.b16 %v816, %v815
    %v842 = vpack.c.b16 %v818, %v817
    %v843 = vpack.c.b16 %v820, %v819
    %v844 = vpack.c.b16 %v822, %v821
    %v845 = vpack.c.b16 %v824, %v823
    %v846 = vpack.c.b16 %v826, %v825
    %v847 = vpack.c.b16 %v828, %v827
    %v848 = vpack.c.b16 %v830, %v829
    %v849 = vpack.c.b16 %v832, %v831
    %v850 = vpack.c.b16 %v834, %v833
    %867 = vmatprep.subr.bf16.mxu0 0
    %868 = vmatpush1.bf16.msra.mxu0 %v835
    %869 = vmatprep.subr.bf16.mxu0 0
    %870 = vmatpush1.bf16.msra.mxu0 %v836
    %871 = vmatprep.subr.bf16.mxu0 0
    %872 = vmatpush1.bf16.msra.mxu0 %v837
    %873 = vmatprep.subr.bf16.mxu0 0
    %874 = vmatpush1.bf16.msra.mxu0 %v838
    %875 = vmatprep.subr.bf16.mxu0 0
    %876 = vmatpush1.bf16.msra.mxu0 %v839
    %877 = vmatprep.subr.bf16.mxu0 0
    %878 = vmatpush1.bf16.msra.mxu0 %v840
    %879 = vmatprep.subr.bf16.mxu0 0
    %880 = vmatpush1.bf16.msra.mxu0 %v841
    %881 = vmatprep.subr.bf16.mxu0 0
    %882 = vmatpush1.bf16.msra.mxu0 %v842
    %883 = vmatprep.subr.bf16.mxu0 0
    %884 = vmatpush1.bf16.msra.mxu0 %v843
    %885 = vmatprep.subr.bf16.mxu0 0
    %886 = vmatpush1.bf16.msra.mxu0 %v844
    %887 = vmatprep.subr.bf16.mxu0 0
    %888 = vmatpush1.bf16.msra.mxu0 %v845
    %889 = vmatprep.subr.bf16.mxu0 0
    %890 = vmatpush1.bf16.msra.mxu0 %v846
    %891 = vmatprep.subr.bf16.mxu0 0
    %892 = vmatpush1.bf16.msra.mxu0 %v847
    %893 = vmatprep.subr.bf16.mxu0 0
    %894 = vmatpush1.bf16.msra.mxu0 %v848
    %895 = vmatprep.subr.bf16.mxu0 0
    %896 = vmatpush1.bf16.msra.mxu0 %v849
    %897 = vmatprep.subr.bf16.mxu0 0
    %898 = vmatpush1.bf16.msra.mxu0 %v850
    %899 = vmatprep.mubr.bf16.mxu0 %v731
    %900 = vmatmul.mubr.bf16.gmra.mrb[0].mxu0 %v730
    %v901 = vpop.f32.mrb[0].mxu0
    %v902 = vadd.f32 %v769, %v901
    %v903 = vpop.f32.mrb[0].mxu0
    %v904 = vpop.f32.mrb[0].mxu0
    %v905 = vadd.f32 %v769, %v904
    %v906 = vpop.f32.mrb[0].mxu0
    %907 = vdwg.mxu0
    %v908 = vld [vmem:[#allocation7] sm:$0xff]
    %v909 = vld [vmem:[#allocation7 + $0x8] sm:$0xff]
    %v910 = vld [vmem:[#allocation7 + $0x10] sm:$0xff]
    %v911 = vld [vmem:[#allocation7 + $0x18] sm:$0xff]
    %v912 = vld [vmem:[#allocation7 + $0x20] sm:$0xff]
    %v913 = vld [vmem:[#allocation7 + $0x28] sm:$0xff]
    %v914 = vld [vmem:[#allocation7 + $0x30] sm:$0xff]
    %v915 = vld [vmem:[#allocation7 + $0x38] sm:$0xff]
    %v916 = vld [vmem:[#allocation7 + $0x40] sm:$0xff]
    %v917 = vld [vmem:[#allocation7 + $0x48] sm:$0xff]
    %v918 = vld [vmem:[#allocation7 + $0x50] sm:$0xff]
    %v919 = vld [vmem:[#allocation7 + $0x58] sm:$0xff]
    %v920 = vld [vmem:[#allocation7 + $0x60] sm:$0xff]
    %v921 = vld [vmem:[#allocation7 + $0x68] sm:$0xff]
    %v922 = vld [vmem:[#allocation7 + $0x70] sm:$0xff]
    %v923 = vld [vmem:[#allocation7 + $0x78] sm:$0xff]
    %v924 = vld [vmem:[#allocation7 + $0x80] sm:$0xff]
    %v925 = vld [vmem:[#allocation7 + $0x88] sm:$0xff]
    %v926 = vld [vmem:[#allocation7 + $0x90] sm:$0xff]
    %v927 = vld [vmem:[#allocation7 + $0x98] sm:$0xff]
    %v928 = vld [vmem:[#allocation7 + $0xa0] sm:$0xff]
    %v929 = vld [vmem:[#allocation7 + $0xa8] sm:$0xff]
    %v930 = vld [vmem:[#allocation7 + $0xb0] sm:$0xff]
    %v931 = vld [vmem:[#allocation7 + $0xb8] sm:$0xff]
    %v932 = vld [vmem:[#allocation7 + $0xc0] sm:$0xff]
    %v933 = vld [vmem:[#allocation7 + $0xc8] sm:$0xff]
    %v934 = vld [vmem:[#allocation7 + $0xd0] sm:$0xff]
    %v935 = vld [vmem:[#allocation7 + $0xd8] sm:$0xff]
    %v936 = vld [vmem:[#allocation7 + $0xe0] sm:$0xff]
    %v937 = vld [vmem:[#allocation7 + $0xe8] sm:$0xff]
    %v938 = vld [vmem:[#allocation7 + $0xf0] sm:$0xff]
    %v939 = vld [vmem:[#allocation7 + $0xf8] sm:$0xff]
    %v940 = vld [vmem:[%s9] sm:$0x3]
    %v942 = vlaneseq
    %v943 = vshrl.u32 %v942, 7
    %v944 = vsub.s32 0, %v943
    %v945 = vrot.slane %v940, %v944
    %v946 = vlaneseq
    %v947 = vshrl.u32 %v946, 7
    %v948 = vsub.s32 1, %v947
    %v949 = vrot.slane %v940, %v948
    %v984 = vunpack.c.l.b16 %v908
    %v985 = vunpack.c.h.b16 %v908
    %v986 = vunpack.c.l.b16 %v909
    %v987 = vunpack.c.h.b16 %v909
    %v988 = vunpack.c.l.b16 %v910
    %v989 = vunpack.c.h.b16 %v910
    %v990 = vunpack.c.l.b16 %v911
    %v991 = vunpack.c.h.b16 %v911
    %v992 = vunpack.c.l.b16 %v912
    %v993 = vunpack.c.h.b16 %v912
    %v994 = vunpack.c.l.b16 %v913
    %v995 = vunpack.c.h.b16 %v913
    %v996 = vunpack.c.l.b16 %v914
    %v997 = vunpack.c.h.b16 %v914
    %v998 = vunpack.c.l.b16 %v915
    %v999 = vunpack.c.h.b16 %v915
    %v1000 = vunpack.c.l.b16 %v916
    %v1001 = vunpack.c.h.b16 %v916
    %v1002 = vunpack.c.l.b16 %v917
    %v1003 = vunpack.c.h.b16 %v917
    %v1004 = vunpack.c.l.b16 %v918
    %v1005 = vunpack.c.h.b16 %v918
    %v1006 = vunpack.c.l.b16 %v919
    %v1007 = vunpack.c.h.b16 %v919
    %v1008 = vunpack.c.l.b16 %v920
    %v1009 = vunpack.c.h.b16 %v920
    %v1010 = vunpack.c.l.b16 %v921
    %v1011 = vunpack.c.h.b16 %v921
    %v1012 = vunpack.c.l.b16 %v922
    %v1013 = vunpack.c.h.b16 %v922
    %v1014 = vunpack.c.l.b16 %v923
    %v1015 = vunpack.c.h.b16 %v923
    %v1016 = vunpack.c.l.b16 %v924
    %v1017 = vunpack.c.h.b16 %v924
    %v1018 = vunpack.c.l.b16 %v925
    %v1019 = vunpack.c.h.b16 %v925
    %v1020 = vunpack.c.l.b16 %v926
    %v1021 = vunpack.c.h.b16 %v926
    %v1022 = vunpack.c.l.b16 %v927
    %v1023 = vunpack.c.h.b16 %v927
    %v1024 = vunpack.c.l.b16 %v928
    %v1025 = vunpack.c.h.b16 %v928
    %v1026 = vunpack.c.l.b16 %v929
    %v1027 = vunpack.c.h.b16 %v929
    %v1028 = vunpack.c.l.b16 %v930
    %v1029 = vunpack.c.h.b16 %v930
    %v1030 = vunpack.c.l.b16 %v931
    %v1031 = vunpack.c.h.b16 %v931
    %v1032 = vunpack.c.l.b16 %v932
    %v1033 = vunpack.c.h.b16 %v932
    %v1034 = vunpack.c.l.b16 %v933
    %v1035 = vunpack.c.h.b16 %v933
    %v1036 = vunpack.c.l.b16 %v934
    %v1037 = vunpack.c.h.b16 %v934
    %v1038 = vunpack.c.l.b16 %v935
    %v1039 = vunpack.c.h.b16 %v935
    %v1040 = vunpack.c.l.b16 %v936
    %v1041 = vunpack.c.h.b16 %v936
    %v1042 = vunpack.c.l.b16 %v937
    %v1043 = vunpack.c.h.b16 %v937
    %v1044 = vunpack.c.l.b16 %v938
    %v1045 = vunpack.c.h.b16 %v938
    %v1046 = vunpack.c.l.b16 %v939
    %v1047 = vunpack.c.h.b16 %v939
    %v1048 = vpack.c.b16 %v986, %v984
    %v1049 = vpack.c.b16 %v987, %v985
    %v1050 = vpack.c.b16 %v990, %v988
    %v1051 = vpack.c.b16 %v991, %v989
    %v1052 = vpack.c.b16 %v994, %v992
    %v1053 = vpack.c.b16 %v995, %v993
    %v1054 = vpack.c.b16 %v998, %v996
    %v1055 = vpack.c.b16 %v999, %v997
    %v1056 = vpack.c.b16 %v1002, %v1000
    %v1057 = vpack.c.b16 %v1003, %v1001
    %v1058 = vpack.c.b16 %v1006, %v1004
    %v1059 = vpack.c.b16 %v1007, %v1005
    %v1060 = vpack.c.b16 %v1010, %v1008
    %v1061 = vpack.c.b16 %v1011, %v1009
    %v1062 = vpack.c.b16 %v1014, %v1012
    %v1063 = vpack.c.b16 %v1015, %v1013
    %v1064 = vpack.c.b16 %v1018, %v1016
    %v1065 = vpack.c.b16 %v1019, %v1017
    %v1066 = vpack.c.b16 %v1022, %v1020
    %v1067 = vpack.c.b16 %v1023, %v1021
    %v1068 = vpack.c.b16 %v1026, %v1024
    %v1069 = vpack.c.b16 %v1027, %v1025
    %v1070 = vpack.c.b16 %v1030, %v1028
    %v1071 = vpack.c.b16 %v1031, %v1029
    %v1072 = vpack.c.b16 %v1034, %v1032
    %v1073 = vpack.c.b16 %v1035, %v1033
    %v1074 = vpack.c.b16 %v1038, %v1036
    %v1075 = vpack.c.b16 %v1039, %v1037
    %v1076 = vpack.c.b16 %v1042, %v1040
    %v1077 = vpack.c.b16 %v1043, %v1041
    %v1078 = vpack.c.b16 %v1046, %v1044
    %v1079 = vpack.c.b16 %v1047, %v1045
    %1112 = vmatprep.subr.bf16.mxu0 %v1049
    %1113 = vmatpush1.bf16.msra.mxu0 %v1048
    %1114 = vmatprep.subr.bf16.mxu0 %v1051
    %1115 = vmatpush1.bf16.msra.mxu0 %v1050
    %1116 = vmatprep.subr.bf16.mxu0 %v1053
    %1117 = vmatpush1.bf16.msra.mxu0 %v1052
    %1118 = vmatprep.subr.bf16.mxu0 %v1055
    %1119 = vmatpush1.bf16.msra.mxu0 %v1054
    %1120 = vmatprep.subr.bf16.mxu0 %v1057
    %1121 = vmatpush1.bf16.msra.mxu0 %v1056
    %1122 = vmatprep.subr.bf16.mxu0 %v1059
    %1123 = vmatpush1.bf16.msra.mxu0 %v1058
    %1124 = vmatprep.subr.bf16.mxu0 %v1061
    %1125 = vmatpush1.bf16.msra.mxu0 %v1060
    %1126 = vmatprep.subr.bf16.mxu0 %v1063
    %1127 = vmatpush1.bf16.msra.mxu0 %v1062
    %1128 = vmatprep.subr.bf16.mxu0 %v1065
    %1129 = vmatpush1.bf16.msra.mxu0 %v1064
    %1130 = vmatprep.subr.bf16.mxu0 %v1067
    %1131 = vmatpush1.bf16.msra.mxu0 %v1066
    %1132 = vmatprep.subr.bf16.mxu0 %v1069
    %1133 = vmatpush1.bf16.msra.mxu0 %v1068
    %1134 = vmatprep.subr.bf16.mxu0 %v1071
    %1135 = vmatpush1.bf16.msra.mxu0 %v1070
    %1136 = vmatprep.subr.bf16.mxu0 %v1073
    %1137 = vmatpush1.bf16.msra.mxu0 %v1072
    %1138 = vmatprep.subr.bf16.mxu0 %v1075
    %1139 = vmatpush1.bf16.msra.mxu0 %v1074
    %1140 = vmatprep.subr.bf16.mxu0 %v1077
    %1141 = vmatpush1.bf16.msra.mxu0 %v1076
    %1142 = vmatprep.subr.bf16.mxu0 %v1079
    %1143 = vmatpush1.bf16.msra.mxu0 %v1078
    %1144 = vmatprep.mubr.bf16.mxu0 %v478
    %1145 = vmatmul.mubr.bf16.gmra.mrb[0].mxu0 %v477
    %v1146 = vpop.f32.mrb[0].mxu0
    %v1147 = vadd.f32 %v945, %v1146
    %v1148 = vpop.f32.mrb[0].mxu0
    %v1149 = vadd.f32 %v949, %v1148
    %v1150 = vpop.f32.mrb[0].mxu0
    %v1151 = vadd.f32 %v945, %v1150
    %v1152 = vpop.f32.mrb[0].mxu0
    %v1153 = vadd.f32 %v949, %v1152
    %1154 = vdwg.mxu0
    %v1155 = vmax.f32 %v1147, 0.0
    %v1156 = vmax.f32 %v1149, 0.0
    %v1157 = vmax.f32 %v1151, 0.0
    %v1158 = vmax.f32 %v1153, 0.0
    %v1159 = vpack.c.bf16 %v1157, %v1155
    %v1160 = vpack.c.bf16 %v1158, %v1156
    %v1161 = vld [vmem:[#allocation8] sm:$0xf]
    %v1162 = vld [vmem:[#allocation8 + $0x4] sm:$0xf]
    %v1163 = vld [vmem:[#allocation8 + $0x8] sm:$0xf]
    %v1164 = vld [vmem:[#allocation8 + $0xc] sm:$0xf]
    %v1165 = vld [vmem:[#allocation8 + $0x10] sm:$0xf]
    %v1166 = vld [vmem:[#allocation8 + $0x14] sm:$0xf]
    %v1167 = vld [vmem:[#allocation8 + $0x18] sm:$0xf]
    %v1168 = vld [vmem:[#allocation8 + $0x1c] sm:$0xf]
    %v1169 = vld [vmem:[#allocation8 + $0x20] sm:$0xf]
    %v1170 = vld [vmem:[#allocation8 + $0x24] sm:$0xf]
    %v1171 = vld [vmem:[#allocation8 + $0x28] sm:$0xf]
    %v1172 = vld [vmem:[#allocation8 + $0x2c] sm:$0xf]
    %v1173 = vld [vmem:[#allocation8 + $0x30] sm:$0xf]
    %v1174 = vld [vmem:[#allocation8 + $0x34] sm:$0xf]
    %v1175 = vld [vmem:[#allocation8 + $0x38] sm:$0xf]
    %v1176 = vld [vmem:[#allocation8 + $0x3c] sm:$0xf]
    %v1177 = vld [vmem:[#allocation8 + $0x40] sm:$0xf]
    %v1178 = vld [vmem:[#allocation8 + $0x44] sm:$0xf]
    %v1179 = vld [vmem:[#allocation8 + $0x48] sm:$0xf]
    %v1180 = vld [vmem:[#allocation8 + $0x4c] sm:$0xf]
    %v1181 = vld [vmem:[#allocation8 + $0x50] sm:$0xf]
    %v1182 = vld [vmem:[#allocation8 + $0x54] sm:$0xf]
    %v1183 = vld [vmem:[#allocation8 + $0x58] sm:$0xf]
    %v1184 = vld [vmem:[#allocation8 + $0x5c] sm:$0xf]
    %v1185 = vld [vmem:[#allocation8 + $0x60] sm:$0xf]
    %v1186 = vld [vmem:[#allocation8 + $0x64] sm:$0xf]
    %v1187 = vld [vmem:[#allocation8 + $0x68] sm:$0xf]
    %v1188 = vld [vmem:[#allocation8 + $0x6c] sm:$0xf]
    %v1189 = vld [vmem:[#allocation8 + $0x70] sm:$0xf]
    %v1190 = vld [vmem:[#allocation8 + $0x74] sm:$0xf]
    %v1191 = vld [vmem:[#allocation8 + $0x78] sm:$0xf]
    %v1192 = vld [vmem:[#allocation8 + $0x7c] sm:$0xf]
    %v1193 = vld [vmem:[%s11] sm:$0x1]
    %v1195 = vlaneseq
    %v1196 = vshrl.u32 %v1195, 7
    %v1197 = vsub.s32 0, %v1196
    %v1198 = vrot.slane %v1193, %v1197
    %v1232 = vunpack.c.l.b16 %v1161
    %v1233 = vunpack.c.l.b16 %v1162
    %v1234 = vunpack.c.l.b16 %v1163
    %v1235 = vunpack.c.l.b16 %v1164
    %v1236 = vunpack.c.l.b16 %v1165
    %v1237 = vunpack.c.l.b16 %v1166
    %v1238 = vunpack.c.l.b16 %v1167
    %v1239 = vunpack.c.l.b16 %v1168
    %v1240 = vunpack.c.l.b16 %v1169
    %v1241 = vunpack.c.l.b16 %v1170
    %v1242 = vunpack.c.l.b16 %v1171
    %v1243 = vunpack.c.l.b16 %v1172
    %v1244 = vunpack.c.l.b16 %v1173
    %v1245 = vunpack.c.l.b16 %v1174
    %v1246 = vunpack.c.l.b16 %v1175
    %v1247 = vunpack.c.l.b16 %v1176
    %v1248 = vunpack.c.l.b16 %v1177
    %v1249 = vunpack.c.l.b16 %v1178
    %v1250 = vunpack.c.l.b16 %v1179
    %v1251 = vunpack.c.l.b16 %v1180
    %v1252 = vunpack.c.l.b16 %v1181
    %v1253 = vunpack.c.l.b16 %v1182
    %v1254 = vunpack.c.l.b16 %v1183
    %v1255 = vunpack.c.l.b16 %v1184
    %v1256 = vunpack.c.l.b16 %v1185
    %v1257 = vunpack.c.l.b16 %v1186
    %v1258 = vunpack.c.l.b16 %v1187
    %v1259 = vunpack.c.l.b16 %v1188
    %v1260 = vunpack.c.l.b16 %v1189
    %v1261 = vunpack.c.l.b16 %v1190
    %v1262 = vunpack.c.l.b16 %v1191
    %v1263 = vunpack.c.l.b16 %v1192
    %v1264 = vpack.c.b16 %v1233, %v1232
    %v1265 = vpack.c.b16 %v1235, %v1234
    %v1266 = vpack.c.b16 %v1237, %v1236
    %v1267 = vpack.c.b16 %v1239, %v1238
    %v1268 = vpack.c.b16 %v1241, %v1240
    %v1269 = vpack.c.b16 %v1243, %v1242
    %v1270 = vpack.c.b16 %v1245, %v1244
    %v1271 = vpack.c.b16 %v1247, %v1246
    %v1272 = vpack.c.b16 %v1249, %v1248
    %v1273 = vpack.c.b16 %v1251, %v1250
    %v1274 = vpack.c.b16 %v1253, %v1252
    %v1275 = vpack.c.b16 %v1255, %v1254
    %v1276 = vpack.c.b16 %v1257, %v1256
    %v1277 = vpack.c.b16 %v1259, %v1258
    %v1278 = vpack.c.b16 %v1261, %v1260
    %v1279 = vpack.c.b16 %v1263, %v1262
    %1296 = vmatprep.subr.bf16.mxu0 0
    %1297 = vmatpush1.bf16.msra.mxu0 %v1264
    %1298 = vmatprep.subr.bf16.mxu0 0
    %1299 = vmatpush1.bf16.msra.mxu0 %v1265
    %1300 = vmatprep.subr.bf16.mxu0 0
    %1301 = vmatpush1.bf16.msra.mxu0 %v1266
    %1302 = vmatprep.subr.bf16.mxu0 0
    %1303 = vmatpush1.bf16.msra.mxu0 %v1267
    %1304 = vmatprep.subr.bf16.mxu0 0
    %1305 = vmatpush1.bf16.msra.mxu0 %v1268
    %1306 = vmatprep.subr.bf16.mxu0 0
    %1307 = vmatpush1.bf16.msra.mxu0 %v1269
    %1308 = vmatprep.subr.bf16.mxu0 0
    %1309 = vmatpush1.bf16.msra.mxu0 %v1270
    %1310 = vmatprep.subr.bf16.mxu0 0
    %1311 = vmatpush1.bf16.msra.mxu0 %v1271
    %1312 = vmatprep.subr.bf16.mxu0 0
    %1313 = vmatpush1.bf16.msra.mxu0 %v1272
    %1314 = vmatprep.subr.bf16.mxu0 0
    %1315 = vmatpush1.bf16.msra.mxu0 %v1273
    %1316 = vmatprep.subr.bf16.mxu0 0
    %1317 = vmatpush1.bf16.msra.mxu0 %v1274
    %1318 = vmatprep.subr.bf16.mxu0 0
    %1319 = vmatpush1.bf16.msra.mxu0 %v1275
    %1320 = vmatprep.subr.bf16.mxu0 0
    %1321 = vmatpush1.bf16.msra.mxu0 %v1276
    %1322 = vmatprep.subr.bf16.mxu0 0
    %1323 = vmatpush1.bf16.msra.mxu0 %v1277
    %1324 = vmatprep.subr.bf16.mxu0 0
    %1325 = vmatpush1.bf16.msra.mxu0 %v1278
    %1326 = vmatprep.subr.bf16.mxu0 0
    %1327 = vmatpush1.bf16.msra.mxu0 %v1279
    %1328 = vmatprep.mubr.bf16.mxu0 %v1160
    %1329 = vmatmul.mubr.bf16.gmra.mrb[0].mxu0 %v1159
    %v1330 = vpop.f32.mrb[0].mxu0
    %v1331 = vadd.f32 %v1198, %v1330
    %v1332 = vpop.f32.mrb[0].mxu0
    %v1333 = vpop.f32.mrb[0].mxu0
    %v1334 = vadd.f32 %v1198, %v1333
    %v1335 = vpop.f32.mrb[0].mxu0
    %1336 = vdwg.mxu0
    %1337 = vst [vmem:[%s19] sm:$0xff] %v902
    %1338 = vst [vmem:[%s19 + $0x8] sm:$0xff] %v905
    %1339 = vst [vmem:[%s20] sm:$0xff] %v1331
    %1340 = vst [vmem:[%s20 + $0x8] sm:$0xff] %v1334
    %v1341 = vld [vmem:[%s1] sm:$0xff]
    %v1342 = vld [vmem:[%s1 + $0x8] sm:$0xff]
    %v1343 = vmul.f32 %v1331, 0.5
    %v1344 = vmul.f32 %v1334, 0.5
    %v1345 = vmul.f32 %v1343, 1.442695
    %v1346 = vpow.pop %v1345
    %v1347 = vmul.f32 %v1344, 1.442695
    %v1348 = vpow.pop %v1347
    %v1349 = vmul.f32 %v1341, %v1346
    %v1350 = vmul.f32 %v1342, %v1348
    %v1351 = vadd.f32 %v1349, %v902
    %v1352 = vadd.f32 %v1350, %v905
    %v1353 = vpack.c.bf16 %v1352, %v1351
    %v1354 = vld [vmem:[#allocation10] sm:$0xff]
    %v1355 = vld [vmem:[#allocation10 + $0x8] sm:$0xff]
    %v1356 = vld [vmem:[#allocation10 + $0x10] sm:$0xff]
    %v1357 = vld [vmem:[#allocation10 + $0x18] sm:$0xff]
    %v1358 = vld [vmem:[#allocation10 + $0x20] sm:$0xff]
    %v1359 = vld [vmem:[#allocation10 + $0x28] sm:$0xff]
    %v1360 = vld [vmem:[#allocation10 + $0x30] sm:$0xff]
    %v1361 = vld [vmem:[#allocation10 + $0x38] sm:$0xff]
    %v1362 = vld [vmem:[#allocation10 + $0x40] sm:$0xff]
    %v1363 = vld [vmem:[#allocation10 + $0x48] sm:$0xff]
    %v1364 = vld [vmem:[#allocation10 + $0x50] sm:$0xff]
    %v1365 = vld [vmem:[#allocation10 + $0x58] sm:$0xff]
    %v1366 = vld [vmem:[#allocation10 + $0x60] sm:$0xff]
    %v1367 = vld [vmem:[#allocation10 + $0x68] sm:$0xff]
    %v1368 = vld [vmem:[#allocation10 + $0x70] sm:$0xff]
    %v1369 = vld [vmem:[#allocation10 + $0x78] sm:$0xff]
    %v1370 = vld [vmem:[%s13] sm:$0x3]
    %v1372 = vlaneseq
    %v1373 = vshrl.u32 %v1372, 7
    %v1374 = vsub.s32 0, %v1373
    %v1375 = vrot.slane %v1370, %v1374
    %v1376 = vlaneseq
    %v1377 = vshrl.u32 %v1376, 7
    %v1378 = vsub.s32 1, %v1377
    %v1379 = vrot.slane %v1370, %v1378
    %v1398 = vunpack.c.l.b16 %v1354
    %v1399 = vunpack.c.h.b16 %v1354
    %v1400 = vunpack.c.l.b16 %v1355
    %v1401 = vunpack.c.h.b16 %v1355
    %v1402 = vunpack.c.l.b16 %v1356
    %v1403 = vunpack.c.h.b16 %v1356
    %v1404 = vunpack.c.l.b16 %v1357
    %v1405 = vunpack.c.h.b16 %v1357
    %v1406 = vunpack.c.l.b16 %v1358
    %v1407 = vunpack.c.h.b16 %v1358
    %v1408 = vunpack.c.l.b16 %v1359
    %v1409 = vunpack.c.h.b16 %v1359
    %v1410 = vunpack.c.l.b16 %v1360
    %v1411 = vunpack.c.h.b16 %v1360
    %v1412 = vunpack.c.l.b16 %v1361
    %v1413 = vunpack.c.h.b16 %v1361
    %v1414 = vunpack.c.l.b16 %v1362
    %v1415 = vunpack.c.h.b16 %v1362
    %v1416 = vunpack.c.l.b16 %v1363
    %v1417 = vunpack.c.h.b16 %v1363
    %v1418 = vunpack.c.l.b16 %v1364
    %v1419 = vunpack.c.h.b16 %v1364
    %v1420 = vunpack.c.l.b16 %v1365
    %v1421 = vunpack.c.h.b16 %v1365
    %v1422 = vunpack.c.l.b16 %v1366
    %v1423 = vunpack.c.h.b16 %v1366
    %v1424 = vunpack.c.l.b16 %v1367
    %v1425 = vunpack.c.h.b16 %v1367
    %v1426 = vunpack.c.l.b16 %v1368
    %v1427 = vunpack.c.h.b16 %v1368
    %v1428 = vunpack.c.l.b16 %v1369
    %v1429 = vunpack.c.h.b16 %v1369
    %v1430 = vpack.c.b16 %v1400, %v1398
    %v1431 = vpack.c.b16 %v1401, %v1399
    %v1432 = vpack.c.b16 %v1404, %v1402
    %v1433 = vpack.c.b16 %v1405, %v1403
    %v1434 = vpack.c.b16 %v1408, %v1406
    %v1435 = vpack.c.b16 %v1409, %v1407
    %v1436 = vpack.c.b16 %v1412, %v1410
    %v1437 = vpack.c.b16 %v1413, %v1411
    %v1438 = vpack.c.b16 %v1416, %v1414
    %v1439 = vpack.c.b16 %v1417, %v1415
    %v1440 = vpack.c.b16 %v1420, %v1418
    %v1441 = vpack.c.b16 %v1421, %v1419
    %v1442 = vpack.c.b16 %v1424, %v1422
    %v1443 = vpack.c.b16 %v1425, %v1423
    %v1444 = vpack.c.b16 %v1428, %v1426
    %v1445 = vpack.c.b16 %v1429, %v1427
    %1462 = vmatprep.subr.bf16.mxu0 %v1431
    %1463 = vmatpush1.bf16.msra.mxu0 %v1430
    %1464 = vmatprep.subr.bf16.mxu0 %v1433
    %1465 = vmatpush1.bf16.msra.mxu0 %v1432
    %1466 = vmatprep.subr.bf16.mxu0 %v1435
    %1467 = vmatpush1.bf16.msra.mxu0 %v1434
    %1468 = vmatprep.subr.bf16.mxu0 %v1437
    %1469 = vmatpush1.bf16.msra.mxu0 %v1436
    %1470 = vmatprep.subr.bf16.mxu0 %v1439
    %1471 = vmatpush1.bf16.msra.mxu0 %v1438
    %1472 = vmatprep.subr.bf16.mxu0 %v1441
    %1473 = vmatpush1.bf16.msra.mxu0 %v1440
    %1474 = vmatprep.subr.bf16.mxu0 %v1443
    %1475 = vmatpush1.bf16.msra.mxu0 %v1442
    %1476 = vmatprep.subr.bf16.mxu0 %v1445
    %1477 = vmatpush1.bf16.msra.mxu0 %v1444
    %1478 = vmatprep.subr.bf16.mxu0 0
    %1479 = vmatpush1.bf16.msra.mxu0 0
    %1480 = vmatprep.subr.bf16.mxu0 0
    %1481 = vmatpush1.bf16.msra.mxu0 0
    %1482 = vmatprep.subr.bf16.mxu0 0
    %1483 = vmatpush1.bf16.msra.mxu0 0
    %1484 = vmatprep.subr.bf16.mxu0 0
    %1485 = vmatpush1.bf16.msra.mxu0 0
    %1486 = vmatprep.subr.bf16.mxu0 0
    %1487 = vmatpush1.bf16.msra.mxu0 0
    %1488 = vmatprep.subr.bf16.mxu0 0
    %1489 = vmatpush1.bf16.msra.mxu0 0
    %1490 = vmatprep.subr.bf16.mxu0 0
    %1491 = vmatpush1.bf16.msra.mxu0 0
    %1492 = vmatprep.subr.bf16.mxu0 0
    %1493 = vmatpush1.bf16.msra.mxu0 0
    %1494 = vmatprep.mubr.bf16.mxu0 0
    %1495 = vmatmul.mubr.bf16.gmra.mrb[0].mxu0 %v1353
    %v1496 = vpop.f32.mrb[0].mxu0
    %v1497 = vadd.f32 %v1375, %v1496
    %v1498 = vpop.f32.mrb[0].mxu0
    %v1499 = vadd.f32 %v1379, %v1498
    %v1500 = vpop.f32.mrb[0].mxu0
    %v1501 = vadd.f32 %v1375, %v1500
    %v1502 = vpop.f32.mrb[0].mxu0
    %v1503 = vadd.f32 %v1379, %v1502
    %1504 = vdwg.mxu0
    %v1505 = vmax.f32 %v1497, 0.0
    %v1506 = vmax.f32 %v1499, 0.0
    %v1507 = vmax.f32 %v1501, 0.0
    %v1508 = vmax.f32 %v1503, 0.0
    %v1509 = vpack.c.bf16 %v1507, %v1505
    %v1510 = vpack.c.bf16 %v1508, %v1506
    %v1511 = vld [vmem:[#allocation11] sm:$0xff]
    %v1512 = vld [vmem:[#allocation11 + $0x8] sm:$0xff]
    %v1513 = vld [vmem:[#allocation11 + $0x10] sm:$0xff]
    %v1514 = vld [vmem:[#allocation11 + $0x18] sm:$0xff]
    %v1515 = vld [vmem:[#allocation11 + $0x20] sm:$0xff]
    %v1516 = vld [vmem:[#allocation11 + $0x28] sm:$0xff]
    %v1517 = vld [vmem:[#allocation11 + $0x30] sm:$0xff]
    %v1518 = vld [vmem:[#allocation11 + $0x38] sm:$0xff]
    %v1519 = vld [vmem:[#allocation11 + $0x40] sm:$0xff]
    %v1520 = vld [vmem:[#allocation11 + $0x48] sm:$0xff]
    %v1521 = vld [vmem:[#allocation11 + $0x50] sm:$0xff]
    %v1522 = vld [vmem:[#allocation11 + $0x58] sm:$0xff]
    %v1523 = vld [vmem:[#allocation11 + $0x60] sm:$0xff]
    %v1524 = vld [vmem:[#allocation11 + $0x68] sm:$0xff]
    %v1525 = vld [vmem:[#allocation11 + $0x70] sm:$0xff]
    %v1526 = vld [vmem:[#allocation11 + $0x78] sm:$0xff]
    %v1527 = vld [vmem:[#allocation11 + $0x80] sm:$0xff]
    %v1528 = vld [vmem:[#allocation11 + $0x88] sm:$0xff]
    %v1529 = vld [vmem:[#allocation11 + $0x90] sm:$0xff]
    %v1530 = vld [vmem:[#allocation11 + $0x98] sm:$0xff]
    %v1531 = vld [vmem:[#allocation11 + $0xa0] sm:$0xff]
    %v1532 = vld [vmem:[#allocation11 + $0xa8] sm:$0xff]
    %v1533 = vld [vmem:[#allocation11 + $0xb0] sm:$0xff]
    %v1534 = vld [vmem:[#allocation11 + $0xb8] sm:$0xff]
    %v1535 = vld [vmem:[#allocation11 + $0xc0] sm:$0xff]
    %v1536 = vld [vmem:[#allocation11 + $0xc8] sm:$0xff]
    %v1537 = vld [vmem:[#allocation11 + $0xd0] sm:$0xff]
    %v1538 = vld [vmem:[#allocation11 + $0xd8] sm:$0xff]
    %v1539 = vld [vmem:[#allocation11 + $0xe0] sm:$0xff]
    %v1540 = vld [vmem:[#allocation11 + $0xe8] sm:$0xff]
    %v1541 = vld [vmem:[#allocation11 + $0xf0] sm:$0xff]
    %v1542 = vld [vmem:[#allocation11 + $0xf8] sm:$0xff]
    %v1543 = vld [vmem:[%s15] sm:$0x3]
    %v1545 = vlaneseq
    %v1546 = vshrl.u32 %v1545, 7
    %v1547 = vsub.s32 0, %v1546
    %v1548 = vrot.slane %v1543, %v1547
    %v1549 = vlaneseq
    %v1550 = vshrl.u32 %v1549, 7
    %v1551 = vsub.s32 1, %v1550
    %v1552 = vrot.slane %v1543, %v1551
    %v1587 = vunpack.c.l.b16 %v1511
    %v1588 = vunpack.c.h.b16 %v1511
    %v1589 = vunpack.c.l.b16 %v1512
    %v1590 = vunpack.c.h.b16 %v1512
    %v1591 = vunpack.c.l.b16 %v1513
    %v1592 = vunpack.c.h.b16 %v1513
    %v1593 = vunpack.c.l.b16 %v1514
    %v1594 = vunpack.c.h.b16 %v1514
    %v1595 = vunpack.c.l.b16 %v1515
    %v1596 = vunpack.c.h.b16 %v1515
    %v1597 = vunpack.c.l.b16 %v1516
    %v1598 = vunpack.c.h.b16 %v1516
    %v1599 = vunpack.c.l.b16 %v1517
    %v1600 = vunpack.c.h.b16 %v1517
    %v1601 = vunpack.c.l.b16 %v1518
    %v1602 = vunpack.c.h.b16 %v1518
    %v1603 = vunpack.c.l.b16 %v1519
    %v1604 = vunpack.c.h.b16 %v1519
    %v1605 = vunpack.c.l.b16 %v1520
    %v1606 = vunpack.c.h.b16 %v1520
    %v1607 = vunpack.c.l.b16 %v1521
    %v1608 = vunpack.c.h.b16 %v1521
    %v1609 = vunpack.c.l.b16 %v1522
    %v1610 = vunpack.c.h.b16 %v1522
    %v1611 = vunpack.c.l.b16 %v1523
    %v1612 = vunpack.c.h.b16 %v1523
    %v1613 = vunpack.c.l.b16 %v1524
    %v1614 = vunpack.c.h.b16 %v1524
    %v1615 = vunpack.c.l.b16 %v1525
    %v1616 = vunpack.c.h.b16 %v1525
    %v1617 = vunpack.c.l.b16 %v1526
    %v1618 = vunpack.c.h.b16 %v1526
    %v1619 = vunpack.c.l.b16 %v1527
    %v1620 = vunpack.c.h.b16 %v1527
    %v1621 = vunpack.c.l.b16 %v1528
    %v1622 = vunpack.c.h.b16 %v1528
    %v1623 = vunpack.c.l.b16 %v1529
    %v1624 = vunpack.c.h.b16 %v1529
    %v1625 = vunpack.c.l.b16 %v1530
    %v1626 = vunpack.c.h.b16 %v1530
    %v1627 = vunpack.c.l.b16 %v1531
    %v1628 = vunpack.c.h.b16 %v1531
    %v1629 = vunpack.c.l.b16 %v1532
    %v1630 = vunpack.c.h.b16 %v1532
    %v1631 = vunpack.c.l.b16 %v1533
    %v1632 = vunpack.c.h.b16 %v1533
    %v1633 = vunpack.c.l.b16 %v1534
    %v1634 = vunpack.c.h.b16 %v1534
    %v1635 = vunpack.c.l.b16 %v1535
    %v1636 = vunpack.c.h.b16 %v1535
    %v1637 = vunpack.c.l.b16 %v1536
    %v1638 = vunpack.c.h.b16 %v1536
    %v1639 = vunpack.c.l.b16 %v1537
    %v1640 = vunpack.c.h.b16 %v1537
    %v1641 = vunpack.c.l.b16 %v1538
    %v1642 = vunpack.c.h.b16 %v1538
    %v1643 = vunpack.c.l.b16 %v1539
    %v1644 = vunpack.c.h.b16 %v1539
    %v1645 = vunpack.c.l.b16 %v1540
    %v1646 = vunpack.c.h.b16 %v1540
    %v1647 = vunpack.c.l.b16 %v1541
    %v1648 = vunpack.c.h.b16 %v1541
    %v1649 = vunpack.c.l.b16 %v1542
    %v1650 = vunpack.c.h.b16 %v1542
    %v1651 = vpack.c.b16 %v1589, %v1587
    %v1652 = vpack.c.b16 %v1590, %v1588
    %v1653 = vpack.c.b16 %v1593, %v1591
    %v1654 = vpack.c.b16 %v1594, %v1592
    %v1655 = vpack.c.b16 %v1597, %v1595
    %v1656 = vpack.c.b16 %v1598, %v1596
    %v1657 = vpack.c.b16 %v1601, %v1599
    %v1658 = vpack.c.b16 %v1602, %v1600
    %v1659 = vpack.c.b16 %v1605, %v1603
    %v1660 = vpack.c.b16 %v1606, %v1604
    %v1661 = vpack.c.b16 %v1609, %v1607
    %v1662 = vpack.c.b16 %v1610, %v1608
    %v1663 = vpack.c.b16 %v1613, %v1611
    %v1664 = vpack.c.b16 %v1614, %v1612
    %v1665 = vpack.c.b16 %v1617, %v1615
    %v1666 = vpack.c.b16 %v1618, %v1616
    %v1667 = vpack.c.b16 %v1621, %v1619
    %v1668 = vpack.c.b16 %v1622, %v1620
    %v1669 = vpack.c.b16 %v1625, %v1623
    %v1670 = vpack.c.b16 %v1626, %v1624
    %v1671 = vpack.c.b16 %v1629, %v1627
    %v1672 = vpack.c.b16 %v1630, %v1628
    %v1673 = vpack.c.b16 %v1633, %v1631
    %v1674 = vpack.c.b16 %v1634, %v1632
    %v1675 = vpack.c.b16 %v1637, %v1635
    %v1676 = vpack.c.b16 %v1638, %v1636
    %v1677 = vpack.c.b16 %v1641, %v1639
    %v1678 = vpack.c.b16 %v1642, %v1640
    %v1679 = vpack.c.b16 %v1645, %v1643
    %v1680 = vpack.c.b16 %v1646, %v1644
    %v1681 = vpack.c.b16 %v1649, %v1647
    %v1682 = vpack.c.b16 %v1650, %v1648
    %1715 = vmatprep.subr.bf16.mxu0 %v1652
    %1716 = vmatpush1.bf16.msra.mxu0 %v1651
    %1717 = vmatprep.subr.bf16.mxu0 %v1654
    %1718 = vmatpush1.bf16.msra.mxu0 %v1653
    %1719 = vmatprep.subr.bf16.mxu0 %v1656
    %1720 = vmatpush1.bf16.msra.mxu0 %v1655
    %1721 = vmatprep.subr.bf16.mxu0 %v1658
    %1722 = vmatpush1.bf16.msra.mxu0 %v1657
    %1723 = vmatprep.subr.bf16.mxu0 %v1660
    %1724 = vmatpush1.bf16.msra.mxu0 %v1659
    %1725 = vmatprep.subr.bf16.mxu0 %v1662
    %1726 = vmatpush1.bf16.msra.mxu0 %v1661
    %1727 = vmatprep.subr.bf16.mxu0 %v1664
    %1728 = vmatpush1.bf16.msra.mxu0 %v1663
    %1729 = vmatprep.subr.bf16.mxu0 %v1666
    %1730 = vmatpush1.bf16.msra.mxu0 %v1665
    %1731 = vmatprep.subr.bf16.mxu0 %v1668
    %1732 = vmatpush1.bf16.msra.mxu0 %v1667
    %1733 = vmatprep.subr.bf16.mxu0 %v1670
    %1734 = vmatpush1.bf16.msra.mxu0 %v1669
    %1735 = vmatprep.subr.bf16.mxu0 %v1672
    %1736 = vmatpush1.bf16.msra.mxu0 %v1671
    %1737 = vmatprep.subr.bf16.mxu0 %v1674
    %1738 = vmatpush1.bf16.msra.mxu0 %v1673
    %1739 = vmatprep.subr.bf16.mxu0 %v1676
    %1740 = vmatpush1.bf16.msra.mxu0 %v1675
    %1741 = vmatprep.subr.bf16.mxu0 %v1678
    %1742 = vmatpush1.bf16.msra.mxu0 %v1677
    %1743 = vmatprep.subr.bf16.mxu0 %v1680
    %1744 = vmatpush1.bf16.msra.mxu0 %v1679
    %1745 = vmatprep.subr.bf16.mxu0 %v1682
    %1746 = vmatpush1.bf16.msra.mxu0 %v1681
    %1747 = vmatprep.mubr.bf16.mxu0 %v1510
    %1748 = vmatmul.mubr.bf16.gmra.mrb[0].mxu0 %v1509
    %v1749 = vpop.f32.mrb[0].mxu0
    %v1750 = vadd.f32 %v1548, %v1749
    %v1751 = vpop.f32.mrb[0].mxu0
    %v1752 = vadd.f32 %v1552, %v1751
    %v1753 = vpop.f32.mrb[0].mxu0
    %v1754 = vadd.f32 %v1548, %v1753
    %v1755 = vpop.f32.mrb[0].mxu0
    %v1756 = vadd.f32 %v1552, %v1755
    %1757 = vdwg.mxu0
    %v1758 = vmax.f32 %v1750, 0.0
    %v1759 = vmax.f32 %v1752, 0.0
    %v1760 = vmax.f32 %v1754, 0.0
    %v1761 = vmax.f32 %v1756, 0.0
    %v1762 = vpack.c.bf16 %v1760, %v1758
    %v1763 = vpack.c.bf16 %v1761, %v1759
    %v1764 = vld [vmem:[#allocation13] sm:$0xf]
    %v1765 = vld [vmem:[#allocation13 + $0x4] sm:$0xf]
    %v1766 = vld [vmem:[#allocation13 + $0x8] sm:$0xf]
    %v1767 = vld [vmem:[#allocation13 + $0xc] sm:$0xf]
    %v1768 = vld [vmem:[#allocation13 + $0x10] sm:$0xf]
    %v1769 = vld [vmem:[#allocation13 + $0x14] sm:$0xf]
    %v1770 = vld [vmem:[#allocation13 + $0x18] sm:$0xf]
    %v1771 = vld [vmem:[#allocation13 + $0x1c] sm:$0xf]
    %v1772 = vld [vmem:[#allocation13 + $0x20] sm:$0xf]
    %v1773 = vld [vmem:[#allocation13 + $0x24] sm:$0xf]
    %v1774 = vld [vmem:[#allocation13 + $0x28] sm:$0xf]
    %v1775 = vld [vmem:[#allocation13 + $0x2c] sm:$0xf]
    %v1776 = vld [vmem:[#allocation13 + $0x30] sm:$0xf]
    %v1777 = vld [vmem:[#allocation13 + $0x34] sm:$0xf]
    %v1778 = vld [vmem:[#allocation13 + $0x38] sm:$0xf]
    %v1779 = vld [vmem:[#allocation13 + $0x3c] sm:$0xf]
    %v1780 = vld [vmem:[#allocation13 + $0x40] sm:$0xf]
    %v1781 = vld [vmem:[#allocation13 + $0x44] sm:$0xf]
    %v1782 = vld [vmem:[#allocation13 + $0x48] sm:$0xf]
    %v1783 = vld [vmem:[#allocation13 + $0x4c] sm:$0xf]
    %v1784 = vld [vmem:[#allocation13 + $0x50] sm:$0xf]
    %v1785 = vld [vmem:[#allocation13 + $0x54] sm:$0xf]
    %v1786 = vld [vmem:[#allocation13 + $0x58] sm:$0xf]
    %v1787 = vld [vmem:[#allocation13 + $0x5c] sm:$0xf]
    %v1788 = vld [vmem:[#allocation13 + $0x60] sm:$0xf]
    %v1789 = vld [vmem:[#allocation13 + $0x64] sm:$0xf]
    %v1790 = vld [vmem:[#allocation13 + $0x68] sm:$0xf]
    %v1791 = vld [vmem:[#allocation13 + $0x6c] sm:$0xf]
    %v1792 = vld [vmem:[#allocation13 + $0x70] sm:$0xf]
    %v1793 = vld [vmem:[#allocation13 + $0x74] sm:$0xf]
    %v1794 = vld [vmem:[#allocation13 + $0x78] sm:$0xf]
    %v1795 = vld [vmem:[#allocation13 + $0x7c] sm:$0xf]
    %v1796 = vld [vmem:[%s17] sm:$0x1]
    %v1798 = vlaneseq
    %v1799 = vshrl.u32 %v1798, 7
    %v1800 = vsub.s32 0, %v1799
    %v1801 = vrot.slane %v1796, %v1800
    %v1835 = vunpack.c.l.b16 %v1764
    %v1836 = vunpack.c.l.b16 %v1765
    %v1837 = vunpack.c.l.b16 %v1766
    %v1838 = vunpack.c.l.b16 %v1767
    %v1839 = vunpack.c.l.b16 %v1768
    %v1840 = vunpack.c.l.b16 %v1769
    %v1841 = vunpack.c.l.b16 %v1770
    %v1842 = vunpack.c.l.b16 %v1771
    %v1843 = vunpack.c.l.b16 %v1772
    %v1844 = vunpack.c.l.b16 %v1773
    %v1845 = vunpack.c.l.b16 %v1774
    %v1846 = vunpack.c.l.b16 %v1775
    %v1847 = vunpack.c.l.b16 %v1776
    %v1848 = vunpack.c.l.b16 %v1777
    %v1849 = vunpack.c.l.b16 %v1778
    %v1850 = vunpack.c.l.b16 %v1779
    %v1851 = vunpack.c.l.b16 %v1780
    %v1852 = vunpack.c.l.b16 %v1781
    %v1853 = vunpack.c.l.b16 %v1782
    %v1854 = vunpack.c.l.b16 %v1783
    %v1855 = vunpack.c.l.b16 %v1784
    %v1856 = vunpack.c.l.b16 %v1785
    %v1857 = vunpack.c.l.b16 %v1786
    %v1858 = vunpack.c.l.b16 %v1787
    %v1859 = vunpack.c.l.b16 %v1788
    %v1860 = vunpack.c.l.b16 %v1789
    %v1861 = vunpack.c.l.b16 %v1790
    %v1862 = vunpack.c.l.b16 %v1791
    %v1863 = vunpack.c.l.b16 %v1792
    %v1864 = vunpack.c.l.b16 %v1793
    %v1865 = vunpack.c.l.b16 %v1794
    %v1866 = vunpack.c.l.b16 %v1795
    %v1867 = vpack.c.b16 %v1836, %v1835
    %v1868 = vpack.c.b16 %v1838, %v1837
    %v1869 = vpack.c.b16 %v1840, %v1839
    %v1870 = vpack.c.b16 %v1842, %v1841
    %v1871 = vpack.c.b16 %v1844, %v1843
    %v1872 = vpack.c.b16 %v1846, %v1845
    %v1873 = vpack.c.b16 %v1848, %v1847
    %v1874 = vpack.c.b16 %v1850, %v1849
    %v1875 = vpack.c.b16 %v1852, %v1851
    %v1876 = vpack.c.b16 %v1854, %v1853
    %v1877 = vpack.c.b16 %v1856, %v1855
    %v1878 = vpack.c.b16 %v1858, %v1857
    %v1879 = vpack.c.b16 %v1860, %v1859
    %v1880 = vpack.c.b16 %v1862, %v1861
    %v1881 = vpack.c.b16 %v1864, %v1863
    %v1882 = vpack.c.b16 %v1866, %v1865
    %1899 = vmatprep.subr.bf16.mxu0 0
    %1900 = vmatpush1.bf16.msra.mxu0 %v1867
    %1901 = vmatprep.subr.bf16.mxu0 0
    %1902 = vmatpush1.bf16.msra.mxu0 %v1868
    %1903 = vmatprep.subr.bf16.mxu0 0
    %1904 = vmatpush1.bf16.msra.mxu0 %v1869
    %1905 = vmatprep.subr.bf16.mxu0 0
    %1906 = vmatpush1.bf16.msra.mxu0 %v1870
    %1907 = vmatprep.subr.bf16.mxu0 0
    %1908 = vmatpush1.bf16.msra.mxu0 %v1871
    %1909 = vmatprep.subr.bf16.mxu0 0
    %1910 = vmatpush1.bf16.msra.mxu0 %v1872
    %1911 = vmatprep.subr.bf16.mxu0 0
    %1912 = vmatpush1.bf16.msra.mxu0 %v1873
    %1913 = vmatprep.subr.bf16.mxu0 0
    %1914 = vmatpush1.bf16.msra.mxu0 %v1874
    %1915 = vmatprep.subr.bf16.mxu0 0
    %1916 = vmatpush1.bf16.msra.mxu0 %v1875
    %1917 = vmatprep.subr.bf16.mxu0 0
    %1918 = vmatpush1.bf16.msra.mxu0 %v1876
    %1919 = vmatprep.subr.bf16.mxu0 0
    %1920 = vmatpush1.bf16.msra.mxu0 %v1877
    %1921 = vmatprep.subr.bf16.mxu0 0
    %1922 = vmatpush1.bf16.msra.mxu0 %v1878
    %1923 = vmatprep.subr.bf16.mxu0 0
    %1924 = vmatpush1.bf16.msra.mxu0 %v1879
    %1925 = vmatprep.subr.bf16.mxu0 0
    %1926 = vmatpush1.bf16.msra.mxu0 %v1880
    %1927 = vmatprep.subr.bf16.mxu0 0
    %1928 = vmatpush1.bf16.msra.mxu0 %v1881
    %1929 = vmatprep.subr.bf16.mxu0 0
    %1930 = vmatpush1.bf16.msra.mxu0 %v1882
    %1931 = vmatprep.mubr.bf16.mxu0 %v1763
    %1932 = vmatmul.mubr.bf16.gmra.mrb[0].mxu0 %v1762
    %v1933 = vpop.f32.mrb[0].mxu0
    %v1934 = vadd.f32 %v1801, %v1933
    %v1935 = vpop.f32.mrb[0].mxu0
    %v1936 = vpop.f32.mrb[0].mxu0
    %v1937 = vadd.f32 %v1801, %v1936
    %v1938 = vpop.f32.mrb[0].mxu0
    %1939 = vdwg.mxu0
    %1940 = vst [vmem:[#allocation14] sm:$0xff] %v1934
    %1941 = vst [vmem:[#allocation14 + $0x8] sm:$0xff] %v1937
    // Predicated region
    $region102: #{vae_forward.1} parent=1 // pred_check
      _
    $region103: #{vae_forward.1} parent=1 // pred_check_branch
      %1943 = sbr.rel (0) target = $region105
    $region104: #{vae_forward.1} parent=1 // pred_region
      %s1945 = ssub.s32 256, 256
      %1946 = vsyncadd [#allocation4], %s1945
      %s1947 = sshll.u32 [#allocation14], 4
      %s1948 = int_to_ptr.vmem [resolvable:$true] %s1947
      %1953 = dma.vmem_to_hbm [thread:$0]  %s1948, 256, %s18, [#allocation4], 128, 128, 8
    $region105: #{vae_forward.1} parent=1 // pred_fallthru
      _
    // Predicated region
    $region106: #{vae_forward.1} parent=1 // pred_check
      _
    $region107: #{vae_forward.1} parent=1 // pred_check_branch
      %1955 = sbr.rel (0) target = $region109
    $region108: #{vae_forward.1} parent=1 // pred_region
      _
    $region109: #{vae_forward.1} parent=1 // pred_fallthru
      _
    // Predicated region
    $region110: #{vae_forward.1} parent=1 // pred_check
      _
    $region111: #{vae_forward.1} parent=1 // pred_check_branch
      %1957 = sbr.rel (0) target = $region113
    $region112: #{vae_forward.1} parent=1 // pred_region
      _
    $region113: #{vae_forward.1} parent=1 // pred_fallthru
      _
    // Predicated region
    $region114: #{vae_forward.1} parent=1 // pred_check
      _
    $region115: #{vae_forward.1} parent=1 // pred_check_branch
      %1959 = sbr.rel (0) target = $region117
    $region116: #{vae_forward.1} parent=1 // pred_region
      %1960 = dma.done [#allocation4], 256
    $region117: #{vae_forward.1} parent=1 // pred_fallthru
      _
    // Predicated region
    $region118: #{vae_forward.1} parent=1 // pred_check
      _
    $region119: #{vae_forward.1} parent=1 // pred_check_branch
      %1962 = sbr.rel (0) target = $region121
    $region120: #{vae_forward.1} parent=1 // pred_region
      _
    $region121: #{vae_forward.1} parent=1 // pred_fallthru
      _
    // Predicated region
    $region122: #{vae_forward.1} parent=1 // pred_check
      _
    $region123: #{vae_forward.1} parent=1 // pred_check_branch
      %1964 = sbr.rel (0) target = $region125
    $region124: #{vae_forward.1} parent=1 // pred_region
      _
    $region125: #{vae_forward.1} parent=1 // pred_fallthru
      _
    %1965 = vsyncpa [#allocation3], 1
    %1966 = vsyncpa [#allocation6], 1
    %1967 = vsyncpa [#allocation9], 1
    %1968 = vsyncpa [#allocation12], 1
    %1969 = vsyncpa [#allocation4], 1

</llo_original>
